<compile_context>
chip_gen: v7x
topology: tpu7x:2x2x1
jax: 0.10.0
libtpu: 0.0.40
codegen_flags: <defaults>
</compile_context>

<pallas_src>
import functools

import jax
import jax.numpy as jnp
from jax.experimental import pallas as pl
from jax.experimental.pallas import tpu as pltpu

F32 = jnp.float32
BF16 = jnp.bfloat16
BN_EPS = 1e-5


# ----------------------------- small helpers --------------------------------

def _round_up(x, m):
    return (x + m - 1) // m * m


def _hw_config():
    """(vmem_limit_bytes, max atom-row tile) picked per TPU generation."""
    vmem_phys = 64 * 1024 * 1024               # conservative default (v7x per-TC)
    try:
        info = pltpu.get_tpu_info()
        vmem_phys = int(getattr(info, "vmem_capacity_bytes", vmem_phys))
    except Exception:
        pass
    if vmem_phys >= 100 * 1024 * 1024:         # v5e / v6e: 128 MiB physical VMEM
        return 96 * 1024 * 1024, 1024
    return 48 * 1024 * 1024, 512               # v7x: 64 MiB per TensorCore


def _pick_conv_tile(n, m, a, e, vmem_limit, tn_cap):
    """Atom-row tile TN (multiple of 16) + padded row count, fit to the VMEM scope."""
    ae = a + e
    per_row = (4 * a * 2              # atom in + out blocks, double-buffered, bf16
               + 2 * m * ae * 2       # [M, TN, A+E] neighbor+edge block, 2 buffers, bf16
               + m * 2 * a * 4        # gate [M, TN, 2A] f32
               + 3 * m * a * 4        # filter / core / product f32 temporaries
               + 8 * a * 4)           # self_g / summed / result rows
    budget = int(vmem_limit * 0.6)
    tn = max(16, min(tn_cap, budget // max(per_row, 1)))
    tn = max(16, (tn // 16) * 16)
    tn = min(tn, _round_up(n, 16))
    grid = -(-n // tn)                          # pad N instead of requiring divisibility
    tn = _round_up(-(-n // grid), 16)           # rebalance so padding waste stays small
    return tn, tn * grid


def _sigmoid(y):
    # exact sigmoid (review: no approximate reciprocal in gate / attention weights)
    return 1.0 / (1.0 + jnp.exp(-y))


def _softplus(y):
    # numerically stable; matches torch.nn.Softplus(beta=1, threshold=20)
    return jnp.maximum(y, 0.0) + jnp.log(1.0 + jnp.exp(-jnp.abs(y)))


# ----------------------------- embedding linear ------------------------------

def _embed_kernel(x_ref, w_ref, b_ref, o_ref):
    o_ref[...] = (jnp.dot(x_ref[...], w_ref[...], preferred_element_type=F32)
                  + b_ref[...]).astype(o_ref.dtype)


def embed_rows(x, w, b, tn, vmem_limit):
    n, k = x.shape
    a = w.shape[1]
    return pl.pallas_call(
        _embed_kernel,
        out_shape=jax.ShapeDtypeStruct((n, a), BF16),
        grid=(n // tn,),
        in_specs=[pl.BlockSpec((tn, k), lambda i: (i, 0)),
                  pl.BlockSpec((k, a), lambda i: (0, 0)),
                  pl.BlockSpec((1, a), lambda i: (0, 0))],
        out_specs=pl.BlockSpec((tn, a), lambda i: (i, 0)),
        compiler_params=pltpu.CompilerParams(
            dimension_semantics=("parallel",), vmem_limit_bytes=vmem_limit),
    )(x, w, b)


# ----------------------------- conv layer kernel -----------------------------

def _conv_kernel(TN, M, A, atom_ref, nbr_ref, wself_ref, wne_ref,
                 b1_ref, s2_ref, t2_ref, o_ref):
    atom = atom_ref[...]                                              # [TN, A] bf16
    # fc_full "self" columns: computed once per atom, broadcast over M neighbors.
    # BN1 (eval) scale/shift and the fc_full bias are pre-folded on the host.
    self_g = (jnp.dot(atom, wself_ref[...], preferred_element_type=F32)
              + b1_ref[...])                                          # [TN, 2A] f32

    # fused neighbor|edge matmul: a single K = A+E MXU pass per tile.
    ne = nbr_ref[...].reshape(M * TN, -1)                             # [M*TN, A+E] bf16
    gate = jnp.dot(ne, wne_ref[...], preferred_element_type=F32)      # [M*TN, 2A] f32
    gate = gate.reshape(M, TN, 2 * A) + self_g[None, :, :]            # [M, TN, 2A]

    nbr_filter = _sigmoid(gate[..., :A])
    nbr_core = jnp.tanh(gate[..., A:])     # softplus1 is nn.Tanh in this variant
    # neighbor-major layout: the M-sum is plain VPU adds over the leading axis.
    summed = jnp.sum(nbr_filter * nbr_core, axis=0)                   # [TN, A] f32
    summed = summed * s2_ref[...] + t2_ref[...]                       # BN2 (eval)
    # residual + softplus2 (= nn.Tanh in this variant)
    o_ref[...] = jnp.tanh(atom.astype(F32) + summed).astype(o_ref.dtype)


def conv_layer(atom, nbr_cat, lp, tn, vmem_limit):
    n_pad, a = atom.shape
    m, _, ae = nbr_cat.shape
    ce = pl.CostEstimate(
        flops=2 * n_pad * 2 * a * (a + m * ae),
        transcendentals=n_pad * (2 * m * a + a),
        bytes_accessed=2 * n_pad * a * 2 + n_pad * m * ae * 2)
    return pl.pallas_call(
        functools.partial(_conv_kernel, tn, m, a),
        out_shape=jax.ShapeDtypeStruct((n_pad, a), BF16),
        grid=(n_pad // tn,),
        in_specs=[pl.BlockSpec((tn, a), lambda i: (i, 0)),
                  pl.BlockSpec((m, tn, ae), lambda i: (0, i, 0)),
                  pl.BlockSpec((a, 2 * a), lambda i: (0, 0)),
                  pl.BlockSpec((ae, 2 * a), lambda i: (0, 0)),
                  pl.BlockSpec((1, 2 * a), lambda i: (0, 0)),
                  pl.BlockSpec((1, a), lambda i: (0, 0)),
                  pl.BlockSpec((1, a), lambda i: (0, 0))],
        out_specs=pl.BlockSpec((tn, a), lambda i: (i, 0)),
        compiler_params=pltpu.CompilerParams(
            dimension_semantics=("parallel",), vmem_limit_bytes=vmem_limit),
        cost_estimate=ce,
    )(atom, nbr_cat, lp["w_self"], lp["w_ne"], lp["b1"], lp["s2"], lp["t2"])


# ----------------------------- fused crystal head ----------------------------

def _head_kernel(atom_ref, mean_ref, onehot_ref, w3_ref, b3_ref,
                 fc1w_ref, fc1b_ref, outw_ref, outb_ref, o_ref):
    atom = atom_ref[...].astype(F32)                                   # [Np, A]
    mean_mat = mean_ref[...]                                           # [C, Np]
    pooled = jnp.dot(mean_mat, atom, preferred_element_type=F32)       # [C, A]
    v_ = jnp.dot(onehot_ref[...], pooled, preferred_element_type=F32)  # [Np, A]
    c = jnp.tanh(jnp.dot(v_, w3_ref[...], preferred_element_type=F32) + b3_ref[...])
    a = _sigmoid(jnp.sum(atom * c, axis=1, keepdims=True))             # [Np, 1] stays in VMEM
    crys = jnp.dot(mean_mat, a * atom, preferred_element_type=F32)     # [C, A]
    h = _softplus(jnp.dot(crys, fc1w_ref[...], preferred_element_type=F32)
                  + fc1b_ref[...])                                     # [C, H]
    o_ref[...] = jnp.sum(h * outw_ref[...], axis=1, keepdims=True) + outb_ref[...]


def crystal_head(atom, mean_mat, onehot, packed, vmem_limit):
    n_pad, a = atom.shape
    c = mean_mat.shape[0]
    h = packed["fc1_w"].shape[1]
    vmem = pl.BlockSpec(memory_space=pltpu.MemorySpace.VMEM)
    ce = pl.CostEstimate(
        flops=2 * n_pad * a * (2 * c + a + 1) + 2 * c * a * h + 2 * c * h,
        transcendentals=n_pad * (a + 1) + c * h,
        bytes_accessed=n_pad * a * 2 + 2 * c * n_pad * 4 + (a * a + a * h) * 4)
    # TODO(synk): single-block head; tile over atoms + segment pooling for very large N/C.
    return pl.pallas_call(
        _head_kernel,
        out_shape=jax.ShapeDtypeStruct((c, 1), F32),
        in_specs=[vmem] * 9,
        out_specs=vmem,
        compiler_params=pltpu.CompilerParams(vmem_limit_bytes=vmem_limit),
        cost_estimate=ce,
    )(atom, mean_mat, onehot, packed["w3_w"], packed["w3_b"],
      packed["fc1_w"], packed["fc1_b"], packed["out_w"], packed["out_b"])


# ----------------------------- parameters ------------------------------------

def _init_linear(key, fin, fout):
    bound = 1.0 / (fin ** 0.5)
    k1, k2 = jax.random.split(key)
    w = jax.random.uniform(k1, (fin, fout), F32, -bound, bound)
    b = jax.random.uniform(k2, (fout,), F32, -bound, bound)
    return w, b


def _init_bn(key, c):
    k1, k2, k3, k4 = jax.random.split(key, 4)
    return dict(gamma=jax.random.uniform(k1, (c,), F32, 0.5, 1.5),
                beta=0.1 * jax.random.normal(k2, (c,), F32),
                mean=0.1 * jax.random.normal(k3, (c,), F32),
                var=jax.random.uniform(k4, (c,), F32, 0.5, 1.5))


def init_params(key, orig_fea, nbr_fea_len, A, n_conv, h_fea_len):
    keys = jax.random.split(key, 4 + n_conv)
    emb_w, emb_b = _init_linear(keys[0], orig_fea, A)
    convs = []
    for l in range(n_conv):
        kc = jax.random.split(keys[1 + l], 3)
        w, b = _init_linear(kc[0], 2 * A + nbr_fea_len, 2 * A)
        bn1 = _init_bn(kc[1], 2 * A)
        bn2 = _init_bn(kc[2], A)
        convs.append(dict(w=w, b=b,
                          bn1_gamma=bn1["gamma"], bn1_beta=bn1["beta"],
                          bn1_mean=bn1["mean"], bn1_var=bn1["var"],
                          bn2_gamma=bn2["gamma"], bn2_beta=bn2["beta"],
                          bn2_mean=bn2["mean"], bn2_var=bn2["var"]))
    w3_w, w3_b = _init_linear(keys[1 + n_conv], A, A)
    fc1_w, fc1_b = _init_linear(keys[2 + n_conv], A, h_fea_len)
    out_w, out_b = _init_linear(keys[3 + n_conv], h_fea_len, 1)
    return dict(emb_w=emb_w, emb_b=emb_b, convs=convs,
                w3_w=w3_w, w3_b=w3_b, fc1_w=fc1_w, fc1_b=fc1_b,
                out_w=out_w, out_b=out_b)


def prepare_params(params):
    """One-time host prep: fold eval-mode BN1/BN2 into fc_full, fuse W_nbr|W_edge,
    cast matmul weights to bf16 (biases / BN affine kept in f32)."""
    a = params["w3_w"].shape[0]
    convs = []
    for p in params["convs"]:
        s1 = p["bn1_gamma"] / jnp.sqrt(p["bn1_var"] + BN_EPS)
        t1 = p["bn1_beta"] - p["bn1_mean"] * s1
        s2 = p["bn2_gamma"] / jnp.sqrt(p["bn2_var"] + BN_EPS)
        t2 = p["bn2_beta"] - p["bn2_mean"] * s2
        w = p["w"] * s1[None, :]              # fold BN1 scale into fc_full weights
        b1 = p["b"] * s1 + t1                 # fold BN1 shift + fc_full bias
        convs.append(dict(
            w_self=w[:a].astype(BF16),        # "self" rows           [A, 2A]
            w_ne=w[a:].astype(BF16),          # fused neighbor|edge   [A+E, 2A]
            b1=b1.reshape(1, -1).astype(F32),
            s2=s2.reshape(1, -1).astype(F32),
            t2=t2.reshape(1, -1).astype(F32)))
    return dict(
        emb_w=params["emb_w"].astype(BF16),
        emb_b=params["emb_b"].reshape(1, -1).astype(F32),
        convs=convs,
        w3_w=params["w3_w"].astype(F32),
        w3_b=params["w3_b"].reshape(1, -1).astype(F32),
        fc1_w=params["fc1_w"].astype(F32),
        fc1_b=params["fc1_b"].reshape(1, -1).astype(F32),
        out_w=params["out_w"].reshape(1, -1).astype(F32),
        out_b=params["out_b"].reshape(1, 1).astype(F32))


# ----------------------------- forward pass ----------------------------------

def cgcnn_forward(packed, atom_fea_orig, nbr_fea, nbr_fea_idx, crystal_ids, n_crystals):
    n, m = nbr_fea_idx.shape
    e = nbr_fea.shape[2]
    a = packed["w3_w"].shape[0]

    vmem_limit, tn_cap = _hw_config()
    tn, n_pad = _pick_conv_tile(n, m, a, e, vmem_limit, tn_cap)
    pad = n_pad - n

    # pad N to a tile multiple; padded rows never feed real rows and are masked
    # out of the crystal pooling via crystal_id = -1.
    x = jnp.pad(atom_fea_orig, ((0, pad), (0, 0))).astype(BF16)
    idx_mn = jnp.pad(nbr_fea_idx.astype(jnp.int32), ((0, pad), (0, 0))).T       # [M, Np]
    edges_mn = jnp.transpose(jnp.pad(nbr_fea, ((0, pad), (0, 0), (0, 0))),
                             (1, 0, 2)).astype(BF16)                            # [M, Np, E]

    atom = embed_rows(x, packed["emb_w"], packed["emb_b"], tn, vmem_limit)      # [Np, A] bf16

    for lp in packed["convs"]:
        # XLA pre-gather + concat (neighbor-major) feeding the fused-K conv kernel;
        # no [N, M, A] concat tensor, no in-kernel scalar gathers.
        nbr_cat = jnp.concatenate([atom[idx_mn], edges_mn], axis=-1)            # [M, Np, A+E]
        atom = conv_layer(atom, nbr_cat, lp, tn, vmem_limit)

    # Crystal membership (PyTorch crystal_atom_idx list) as dense one-hot / mean maps.
    cid = jnp.pad(crystal_ids, (0, pad), constant_values=-1)
    onehot = (cid[:, None] == jnp.arange(n_crystals)[None, :]).astype(F32)      # [Np, C]
    counts = jnp.maximum(jnp.sum(onehot, axis=0), 1.0)    # empty crystals -> fc_out bias
    mean_mat = (onehot / counts[None, :]).T                                     # [C, Np]

    out = crystal_head(atom, mean_mat, onehot, packed, vmem_limit)              # [C, 1]
    return out, atom[:n].astype(F32)


# ----------------------------- driver -----------------------------------------

if __name__ == "__main__":
    N, M = 16, 8                # atoms, neighbors per atom
    ORIG, NBR = 32, 16          # orig_atom_fea_len, nbr_fea_len
    A, H, NCONV = 64, 128, 3    # atom_fea_len, h_fea_len, n_conv
    N_CRYSTALS = 2

    key = jax.random.PRNGKey(0)
    kp, kx, kn, ki = jax.random.split(key, 4)

    params = init_params(kp, ORIG, NBR, A, NCONV, H)
    packed = prepare_params(params)        # BN folding + bf16 casts: once, not per call
    atom_fea = jax.random.normal(kx, (N, ORIG), F32)
    nbr_fea = jax.random.normal(kn, (N, M, NBR), F32)
    nbr_fea_idx = jax.random.randint(ki, (N, M), 0, N)
    # atoms 0..7 -> crystal 0, atoms 8..15 -> crystal 1 (contiguous grouping)
    crystal_ids = jnp.repeat(jnp.arange(N_CRYSTALS, dtype=jnp.int32), N // N_CRYSTALS)

    fwd = jax.jit(cgcnn_forward, static_argnums=(5,))
    out, atom_out = fwd(packed, atom_fea, nbr_fea, nbr_fea_idx, crystal_ids, N_CRYSTALS)
    jax.block_until_ready((out, atom_out))
    assert out.shape == (N_CRYSTALS, 1) and atom_out.shape == (N, A)
    print("KERNEL_OK")
</pallas_src>

<mosaic_0001>
module attributes {stable_mosaic.version = 11 : i64} {
  func.func @_embed_kernel(%arg0: i32, %arg1: memref<16x32xbf16, #tpu.memory_space<vmem>>, %arg2: memref<32x64xbf16, #tpu.memory_space<vmem>>, %arg3: memref<1x64xf32, #tpu.memory_space<vmem>>, %arg4: memref<16x64xbf16, #tpu.memory_space<vmem>>) attributes {dimension_semantics = [#tpu.dimension_semantics<parallel>], iteration_bounds = array<i64: 1>, scalar_prefetch = 0 : i64, scratch_operands = 0 : i64, tpu.core_type = #tpu.core_type<tc>, window_params = [{transform_indices = @transform_0, window_bounds = array<i64: 16, 32>}, {pipeline_mode = #tpu.pipeline_mode<synchronous>, transform_indices = @transform_1, window_bounds = array<i64: 32, 64>}, {pipeline_mode = #tpu.pipeline_mode<synchronous>, transform_indices = @transform_2, window_bounds = array<i64: 1, 64>}, {transform_indices = @transform_3, window_bounds = array<i64: 16, 64>}]} {
    %c0 = arith.constant 0 : index
    %c0_0 = arith.constant 0 : index
    %0 = vector.load %arg1[%c0, %c0_0] : memref<16x32xbf16, #tpu.memory_space<vmem>>, vector<16x32xbf16>
    %c0_1 = arith.constant 0 : index
    %c0_2 = arith.constant 0 : index
    %1 = vector.load %arg2[%c0_1, %c0_2] : memref<32x64xbf16, #tpu.memory_space<vmem>>, vector<32x64xbf16>
    %cst = arith.constant dense<0.000000e+00> : vector<16x64xf32>
    %2 = tpu.matmul %0, %1, %cst {dimension_numbers = #tpu.dot_dimension_numbers<[1], [0], [0], [1], [0, 0, 1, 1], [], []>} : vector<16x32xbf16>, vector<32x64xbf16>, vector<16x64xf32> -> vector<16x64xf32>
    %c0_3 = arith.constant 0 : index
    %c0_4 = arith.constant 0 : index
    %3 = vector.load %arg3[%c0_3, %c0_4] : memref<1x64xf32, #tpu.memory_space<vmem>>, vector<1x64xf32>
    %4 = vector.broadcast %3 : vector<1x64xf32> to vector<16x64xf32>
    %5 = arith.addf %2, %4 : vector<16x64xf32>
    %6 = arith.truncf %5 : vector<16x64xf32> to vector<16x64xbf16>
    %c0_5 = arith.constant 0 : index
    %c0_6 = arith.constant 0 : index
    %7 = vector.load %arg4[%c0_5, %c0_6] : memref<16x64xbf16, #tpu.memory_space<vmem>>, vector<16x64xbf16>
    tpu.vector_store %arg4[%c0_5, %c0_6], %6 {strides = array<i32>} : memref<16x64xbf16, #tpu.memory_space<vmem>>, vector<16x64xbf16>,
    return
  }
  func.func @transform_0(%arg0: i32) -> (i32, i32) {
    %c0_i32 = arith.constant 0 : i32
    %c0_i32_0 = arith.constant 0 : i32
    return %arg0, %c0_i32 : i32, i32
  }
  func.func @transform_1(%arg0: i32) -> (i32, i32) {
    %c0_i32 = arith.constant 0 : i32
    %c0_i32_0 = arith.constant 0 : i32
    %c0_i32_1 = arith.constant 0 : i32
    return %c0_i32, %c0_i32_0 : i32, i32
  }
  func.func @transform_2(%arg0: i32) -> (i32, i32) {
    %c0_i32 = arith.constant 0 : i32
    %c0_i32_0 = arith.constant 0 : i32
    %c0_i32_1 = arith.constant 0 : i32
    return %c0_i32, %c0_i32_0 : i32, i32
  }
  func.func @transform_3(%arg0: i32) -> (i32, i32) {
    %c0_i32 = arith.constant 0 : i32
    %c0_i32_0 = arith.constant 0 : i32
    return %arg0, %c0_i32 : i32, i32
  }
}

module attributes {stable_mosaic.version = 11 : i64} {
  func.func @_conv_kernel(%arg0: i32, %arg1: memref<16x64xbf16, #tpu.memory_space<vmem>>, %arg2: memref<8x16x80xbf16, #tpu.memory_space<vmem>>, %arg3: memref<64x128xbf16, #tpu.memory_space<vmem>>, %arg4: memref<80x128xbf16, #tpu.memory_space<vmem>>, %arg5: memref<1x128xf32, #tpu.memory_space<vmem>>, %arg6: memref<1x64xf32, #tpu.memory_space<vmem>>, %arg7: memref<1x64xf32, #tpu.memory_space<vmem>>, %arg8: memref<16x64xbf16, #tpu.memory_space<vmem>>) attributes {dimension_semantics = [#tpu.dimension_semantics<parallel>], iteration_bounds = array<i64: 1>, scalar_prefetch = 0 : i64, scratch_operands = 0 : i64, tpu.core_type = #tpu.core_type<tc>, window_params = [{transform_indices = @transform_0, window_bounds = array<i64: 16, 64>}, {transform_indices = @transform_1, window_bounds = array<i64: 8, 16, 80>}, {pipeline_mode = #tpu.pipeline_mode<synchronous>, transform_indices = @transform_2, window_bounds = array<i64: 64, 128>}, {pipeline_mode = #tpu.pipeline_mode<synchronous>, transform_indices = @transform_3, window_bounds = array<i64: 80, 128>}, {pipeline_mode = #tpu.pipeline_mode<synchronous>, transform_indices = @transform_4, window_bounds = array<i64: 1, 128>}, {pipeline_mode = #tpu.pipeline_mode<synchronous>, transform_indices = @transform_5, window_bounds = array<i64: 1, 64>}, {pipeline_mode = #tpu.pipeline_mode<synchronous>, transform_indices = @transform_6, window_bounds = array<i64: 1, 64>}, {transform_indices = @transform_7, window_bounds = array<i64: 16, 64>}]} {
    %c0 = arith.constant 0 : index
    %c0_0 = arith.constant 0 : index
    %0 = vector.load %arg1[%c0, %c0_0] : memref<16x64xbf16, #tpu.memory_space<vmem>>, vector<16x64xbf16>
    %c0_1 = arith.constant 0 : index
    %c0_2 = arith.constant 0 : index
    %1 = vector.load %arg3[%c0_1, %c0_2] : memref<64x128xbf16, #tpu.memory_space<vmem>>, vector<64x128xbf16>
    %cst = arith.constant dense<0.000000e+00> : vector<16x128xf32>
    %2 = tpu.matmul %0, %1, %cst {dimension_numbers = #tpu.dot_dimension_numbers<[1], [0], [0], [1], [0, 0, 1, 1], [], []>} : vector<16x64xbf16>, vector<64x128xbf16>, vector<16x128xf32> -> vector<16x128xf32>
    %c0_3 = arith.constant 0 : index
    %c0_4 = arith.constant 0 : index
    %3 = vector.load %arg5[%c0_3, %c0_4] : memref<1x128xf32, #tpu.memory_space<vmem>>, vector<1x128xf32>
    %4 = vector.broadcast %3 : vector<1x128xf32> to vector<16x128xf32>
    %5 = arith.addf %2, %4 : vector<16x128xf32>
    %c0_5 = arith.constant 0 : index
    %c0_6 = arith.constant 0 : index
    %c0_7 = arith.constant 0 : index
    %6 = vector.load %arg2[%c0_5, %c0_6, %c0_7] : memref<8x16x80xbf16, #tpu.memory_space<vmem>>, vector<8x16x80xbf16>
    %7 = vector.shape_cast %6 : vector<8x16x80xbf16> to vector<128x80xbf16>
    %c0_8 = arith.constant 0 : index
    %c0_9 = arith.constant 0 : index
    %8 = vector.load %arg4[%c0_8, %c0_9] : memref<80x128xbf16, #tpu.memory_space<vmem>>, vector<80x128xbf16>
    %cst_10 = arith.constant dense<0.000000e+00> : vector<128x128xf32>
    %9 = tpu.matmul %7, %8, %cst_10 {dimension_numbers = #tpu.dot_dimension_numbers<[1], [0], [0], [1], [0, 0, 1, 1], [], []>} : vector<128x80xbf16>, vector<80x128xbf16>, vector<128x128xf32> -> vector<128x128xf32>
    %10 = vector.shape_cast %9 : vector<128x128xf32> to vector<8x16x128xf32>
    %11 = vector.shape_cast %5 : vector<16x128xf32> to vector<1x16x128xf32>
    %12 = vector.broadcast %11 : vector<1x16x128xf32> to vector<8x16x128xf32>
    %13 = arith.addf %10, %12 : vector<8x16x128xf32>
    %14 = vector.extract_strided_slice %13 {offsets = [0, 0, 0], sizes = [8, 16, 64], strides = [1, 1, 1]} : vector<8x16x128xf32> to vector<8x16x64xf32>
    %cst_11 = arith.constant 0.000000e+00 : f32
    %15 = vector.broadcast %cst_11 : f32 to vector<8x16x64xf32>
    %16 = arith.subf %15, %14 : vector<8x16x64xf32>
    %17 = math.exp %16 : vector<8x16x64xf32>
    %cst_12 = arith.constant 1.000000e+00 : f32
    %18 = vector.broadcast %cst_12 : f32 to vector<8x16x64xf32>
    %19 = arith.addf %18, %17 : vector<8x16x64xf32>
    %cst_13 = arith.constant 1.000000e+00 : f32
    %20 = vector.broadcast %cst_13 : f32 to vector<8x16x64xf32>
    %21 = arith.divf %20, %19 : vector<8x16x64xf32>
    %22 = vector.extract_strided_slice %13 {offsets = [0, 0, 64], sizes = [8, 16, 64], strides = [1, 1, 1]} : vector<8x16x128xf32> to vector<8x16x64xf32>
    %23 = math.tanh %22 : vector<8x16x64xf32>
    %24 = arith.mulf %21, %23 : vector<8x16x64xf32>
    %cst_14 = arith.constant dense<0.000000e+00> : vector<16x64xf32>
    %25 = vector.multi_reduction <add>, %24, %cst_14 [0] : vector<8x16x64xf32> to vector<16x64xf32>
    %c0_15 = arith.constant 0 : index
    %c0_16 = arith.constant 0 : index
    %26 = vector.load %arg6[%c0_15, %c0_16] : memref<1x64xf32, #tpu.memory_space<vmem>>, vector<1x64xf32>
    %27 = vector.broadcast %26 : vector<1x64xf32> to vector<16x64xf32>
    %28 = arith.mulf %25, %27 : vector<16x64xf32>
    %c0_17 = arith.constant 0 : index
    %c0_18 = arith.constant 0 : index
    %29 = vector.load %arg7[%c0_17, %c0_18] : memref<1x64xf32, #tpu.memory_space<vmem>>, vector<1x64xf32>
    %30 = vector.broadcast %29 : vector<1x64xf32> to vector<16x64xf32>
    %31 = arith.addf %28, %30 : vector<16x64xf32>
    %32 = arith.extf %0 : vector<16x64xbf16> to vector<16x64xf32>
    %33 = arith.addf %32, %31 : vector<16x64xf32>
    %34 = math.tanh %33 : vector<16x64xf32>
    %35 = arith.truncf %34 : vector<16x64xf32> to vector<16x64xbf16>
    %c0_19 = arith.constant 0 : index
    %c0_20 = arith.constant 0 : index
    %36 = vector.load %arg8[%c0_19, %c0_20] : memref<16x64xbf16, #tpu.memory_space<vmem>>, vector<16x64xbf16>
    tpu.vector_store %arg8[%c0_19, %c0_20], %35 {strides = array<i32>} : memref<16x64xbf16, #tpu.memory_space<vmem>>, vector<16x64xbf16>,
    return
  }
  func.func @transform_0(%arg0: i32) -> (i32, i32) {
    %c0_i32 = arith.constant 0 : i32
    %c0_i32_0 = arith.constant 0 : i32
    return %arg0, %c0_i32 : i32, i32
  }
  func.func @transform_1(%arg0: i32) -> (i32, i32, i32) {
    %c0_i32 = arith.constant 0 : i32
    %c0_i32_0 = arith.constant 0 : i32
    %c0_i32_1 = arith.constant 0 : i32
    return %c0_i32, %arg0, %c0_i32_0 : i32, i32, i32
  }
  func.func @transform_2(%arg0: i32) -> (i32, i32) {
    %c0_i32 = arith.constant 0 : i32
    %c0_i32_0 = arith.constant 0 : i32
    %c0_i32_1 = arith.constant 0 : i32
    return %c0_i32, %c0_i32_0 : i32, i32
  }
  func.func @transform_3(%arg0: i32) -> (i32, i32) {
    %c0_i32 = arith.constant 0 : i32
    %c0_i32_0 = arith.constant 0 : i32
    %c0_i32_1 = arith.constant 0 : i32
    return %c0_i32, %c0_i32_0 : i32, i32
  }
  func.func @transform_4(%arg0: i32) -> (i32, i32) {
    %c0_i32 = arith.constant 0 : i32
    %c0_i32_0 = arith.constant 0 : i32
    %c0_i32_1 = arith.constant 0 : i32
    return %c0_i32, %c0_i32_0 : i32, i32
  }
  func.func @transform_5(%arg0: i32) -> (i32, i32) {
    %c0_i32 = arith.constant 0 : i32
    %c0_i32_0 = arith.constant 0 : i32
    %c0_i32_1 = arith.constant 0 : i32
    return %c0_i32, %c0_i32_0 : i32, i32
  }
  func.func @transform_6(%arg0: i32) -> (i32, i32) {
    %c0_i32 = arith.constant 0 : i32
    %c0_i32_0 = arith.constant 0 : i32
    %c0_i32_1 = arith.constant 0 : i32
    return %c0_i32, %c0_i32_0 : i32, i32
  }
  func.func @transform_7(%arg0: i32) -> (i32, i32) {
    %c0_i32 = arith.constant 0 : i32
    %c0_i32_0 = arith.constant 0 : i32
    return %arg0, %c0_i32 : i32, i32
  }
}

module attributes {stable_mosaic.version = 11 : i64} {
  func.func @_head_kernel(%arg0: memref<16x64xbf16, #tpu.memory_space<vmem>>, %arg1: memref<2x16xf32, #tpu.memory_space<vmem>>, %arg2: memref<16x2xf32, #tpu.memory_space<vmem>>, %arg3: memref<64x64xf32, #tpu.memory_space<vmem>>, %arg4: memref<1x64xf32, #tpu.memory_space<vmem>>, %arg5: memref<64x128xf32, #tpu.memory_space<vmem>>, %arg6: memref<1x128xf32, #tpu.memory_space<vmem>>, %arg7: memref<1x128xf32, #tpu.memory_space<vmem>>, %arg8: memref<1x1xf32, #tpu.memory_space<vmem>>, %arg9: memref<2x1xf32, #tpu.memory_space<vmem>>) attributes {dimension_semantics = [], scalar_prefetch = 0 : i64, scratch_operands = 0 : i64, tpu.core_type = #tpu.core_type<tc>} {
    %c0 = arith.constant 0 : index
    %c0_0 = arith.constant 0 : index
    %0 = vector.load %arg0[%c0, %c0_0] : memref<16x64xbf16, #tpu.memory_space<vmem>>, vector<16x64xbf16>
    %1 = arith.extf %0 : vector<16x64xbf16> to vector<16x64xf32>
    %c0_1 = arith.constant 0 : index
    %c0_2 = arith.constant 0 : index
    %2 = vector.load %arg1[%c0_1, %c0_2] : memref<2x16xf32, #tpu.memory_space<vmem>>, vector<2x16xf32>
    %cst = arith.constant dense<0.000000e+00> : vector<2x64xf32>
    %3 = tpu.matmul %2, %1, %cst {dimension_numbers = #tpu.dot_dimension_numbers<[1], [0], [0], [1], [0, 0, 1, 1], [], []>} : vector<2x16xf32>, vector<16x64xf32>, vector<2x64xf32> -> vector<2x64xf32>
    %c0_3 = arith.constant 0 : index
    %c0_4 = arith.constant 0 : index
    %4 = vector.load %arg2[%c0_3, %c0_4] : memref<16x2xf32, #tpu.memory_space<vmem>>, vector<16x2xf32>
    %cst_5 = arith.constant dense<0.000000e+00> : vector<16x64xf32>
    %5 = tpu.matmul %4, %3, %cst_5 {dimension_numbers = #tpu.dot_dimension_numbers<[1], [0], [0], [1], [0, 0, 1, 1], [], []>} : vector<16x2xf32>, vector<2x64xf32>, vector<16x64xf32> -> vector<16x64xf32>
    %c0_6 = arith.constant 0 : index
    %c0_7 = arith.constant 0 : index
    %6 = vector.load %arg3[%c0_6, %c0_7] : memref<64x64xf32, #tpu.memory_space<vmem>>, vector<64x64xf32>
    %cst_8 = arith.constant dense<0.000000e+00> : vector<16x64xf32>
    %7 = tpu.matmul %5, %6, %cst_8 {dimension_numbers = #tpu.dot_dimension_numbers<[1], [0], [0], [1], [0, 0, 1, 1], [], []>} : vector<16x64xf32>, vector<64x64xf32>, vector<16x64xf32> -> vector<16x64xf32>
    %c0_9 = arith.constant 0 : index
    %c0_10 = arith.constant 0 : index
    %8 = vector.load %arg4[%c0_9, %c0_10] : memref<1x64xf32, #tpu.memory_space<vmem>>, vector<1x64xf32>
    %9 = vector.broadcast %8 : vector<1x64xf32> to vector<16x64xf32>
    %10 = arith.addf %7, %9 : vector<16x64xf32>
    %11 = math.tanh %10 : vector<16x64xf32>
    %12 = arith.mulf %1, %11 : vector<16x64xf32>
    %cst_11 = arith.constant dense<0.000000e+00> : vector<16xf32>
    %13 = vector.multi_reduction <add>, %12, %cst_11 [1] : vector<16x64xf32> to vector<16xf32>
    %14 = vector.shape_cast %13 : vector<16xf32> to vector<16x1xf32>
    %cst_12 = arith.constant 0.000000e+00 : f32
    %15 = vector.broadcast %cst_12 : f32 to vector<16x1xf32>
    %16 = arith.subf %15, %14 : vector<16x1xf32>
    %17 = math.exp %16 : vector<16x1xf32>
    %cst_13 = arith.constant 1.000000e+00 : f32
    %18 = vector.broadcast %cst_13 : f32 to vector<16x1xf32>
    %19 = arith.addf %18, %17 : vector<16x1xf32>
    %cst_14 = arith.constant 1.000000e+00 : f32
    %20 = vector.broadcast %cst_14 : f32 to vector<16x1xf32>
    %21 = arith.divf %20, %19 : vector<16x1xf32>
    %22 = vector.broadcast %21 : vector<16x1xf32> to vector<16x64xf32>
    %23 = arith.mulf %22, %1 : vector<16x64xf32>
    %cst_15 = arith.constant dense<0.000000e+00> : vector<2x64xf32>
    %24 = tpu.matmul %2, %23, %cst_15 {dimension_numbers = #tpu.dot_dimension_numbers<[1], [0], [0], [1], [0, 0, 1, 1], [], []>} : vector<2x16xf32>, vector<16x64xf32>, vector<2x64xf32> -> vector<2x64xf32>
    %c0_16 = arith.constant 0 : index
    %c0_17 = arith.constant 0 : index
    %25 = vector.load %arg5[%c0_16, %c0_17] : memref<64x128xf32, #tpu.memory_space<vmem>>, vector<64x128xf32>
    %cst_18 = arith.constant dense<0.000000e+00> : vector<2x128xf32>
    %26 = tpu.matmul %24, %25, %cst_18 {dimension_numbers = #tpu.dot_dimension_numbers<[1], [0], [0], [1], [0, 0, 1, 1], [], []>} : vector<2x64xf32>, vector<64x128xf32>, vector<2x128xf32> -> vector<2x128xf32>
    %c0_19 = arith.constant 0 : index
    %c0_20 = arith.constant 0 : index
    %27 = vector.load %arg6[%c0_19, %c0_20] : memref<1x128xf32, #tpu.memory_space<vmem>>, vector<1x128xf32>
    %28 = vector.broadcast %27 : vector<1x128xf32> to vector<2x128xf32>
    %29 = arith.addf %26, %28 : vector<2x128xf32>
    %cst_21 = arith.constant 0.000000e+00 : f32
    %30 = vector.broadcast %cst_21 : f32 to vector<2x128xf32>
    %31 = arith.maximumf %29, %30 : vector<2x128xf32>
    %32 = math.absf %29 : vector<2x128xf32>
    %cst_22 = arith.constant 0.000000e+00 : f32
    %33 = vector.broadcast %cst_22 : f32 to vector<2x128xf32>
    %34 = arith.subf %33, %32 : vector<2x128xf32>
    %35 = math.exp %34 : vector<2x128xf32>
    %cst_23 = arith.constant 1.000000e+00 : f32
    %36 = vector.broadcast %cst_23 : f32 to vector<2x128xf32>
    %37 = arith.addf %36, %35 : vector<2x128xf32>
    %38 = math.log %37 : vector<2x128xf32>
    %39 = arith.addf %31, %38 : vector<2x128xf32>
    %c0_24 = arith.constant 0 : index
    %c0_25 = arith.constant 0 : index
    %40 = vector.load %arg7[%c0_24, %c0_25] : memref<1x128xf32, #tpu.memory_space<vmem>>, vector<1x128xf32>
    %41 = vector.broadcast %40 : vector<1x128xf32> to vector<2x128xf32>
    %42 = arith.mulf %39, %41 : vector<2x128xf32>
    %cst_26 = arith.constant dense<0.000000e+00> : vector<2xf32>
    %43 = vector.multi_reduction <add>, %42, %cst_26 [1] : vector<2x128xf32> to vector<2xf32>
    %44 = vector.shape_cast %43 : vector<2xf32> to vector<2x1xf32>
    %c0_27 = arith.constant 0 : index
    %c0_28 = arith.constant 0 : index
    %45 = vector.load %arg8[%c0_27, %c0_28] : memref<1x1xf32, #tpu.memory_space<vmem>>, vector<1x1xf32>
    %46 = vector.broadcast %45 : vector<1x1xf32> to vector<2x1xf32>
    %47 = arith.addf %44, %46 : vector<2x1xf32>
    %c0_29 = arith.constant 0 : index
    %c0_30 = arith.constant 0 : index
    %48 = vector.load %arg9[%c0_29, %c0_30] : memref<2x1xf32, #tpu.memory_space<vmem>>, vector<2x1xf32>
    tpu.vector_store %arg9[%c0_29, %c0_30], %47 {strides = array<i32>} : memref<2x1xf32, #tpu.memory_space<vmem>>, vector<2x1xf32>,
    return
  }
}

</mosaic_0001>

<llo_original>
// kernel: cgcnn_forward.5
$region0: #{cgcnn_forward.5}
  #allocation0 [shape = 'u32[]', space=smem, size = 0x4, offset = 0x4, fixed_abs, tag = 'smem constant byte address 0x4 - core index']
  #allocation1 [shape = 'u32[144,128]{1,0:T(1,128)}', space=vmem, size = 0x12000, scoped, tag = 'internal scratch']
  %s0 = inlined_call_operand.vmem [shape: bf16[16,32], index: 0, kind: input, shape index: {}]
  %s1 = inlined_call_operand.vmem [shape: bf16[32,64], index: 1, kind: input, shape index: {}]
  %s2 = inlined_call_operand.vmem [shape: f32[1,64], index: 2, kind: input, shape index: {}]
  %s3 = inlined_call_operand.vmem [shape: bf16[16,64], index: 3, kind: output, shape index: {}]
  %s4 = sld [smem:[#allocation0]]
  $region22: #{cgcnn_forward.5} parent=0
    _
  %s6 = ssub.s32 1, %s4
  %s7 = scalar_select 0, %s6, %s4
  // Predicated region
  $region2: #{cgcnn_forward.5} parent=0 // pred_check
    _
  $region3: #{cgcnn_forward.5} parent=0 // pred_check_branch
    %9 = sbr.rel (0) target = $region5
  $region4: #{cgcnn_forward.5} parent=0 // pred_region
    _
  $region5: #{cgcnn_forward.5} parent=0 // pred_fallthru
    _
  // Predicated region
  $region6: #{cgcnn_forward.5} parent=0 // pred_check
    _
  $region7: #{cgcnn_forward.5} parent=0 // pred_check_branch
    %11 = sbr.rel (0) target = $region9
  $region8: #{cgcnn_forward.5} parent=0 // pred_region
    _
  $region9: #{cgcnn_forward.5} parent=0 // pred_fallthru
    _
  // Predicated region
  $region10: #{cgcnn_forward.5} parent=0 // pred_check
    _
  $region11: #{cgcnn_forward.5} parent=0 // pred_check_branch
    %13 = sbr.rel (0) target = $region13
  $region12: #{cgcnn_forward.5} parent=0 // pred_region
    _
  $region13: #{cgcnn_forward.5} parent=0 // pred_fallthru
    _
  %v15 = vld [vmem:[%s0] sm:$0xf]
  %v16 = vld [vmem:[%s0 + $0x4] sm:$0xf]
  %v17 = vld [vmem:[%s1] sm:$0xf]
  %v18 = vld [vmem:[%s1 + $0x4] sm:$0xf]
  %v19 = vld [vmem:[%s1 + $0x8] sm:$0xf]
  %v20 = vld [vmem:[%s1 + $0xc] sm:$0xf]
  %v21 = vld [vmem:[%s2] sm:$0x1]
  %v23 = vlaneseq
  %v24 = vshrl.u32 %v23, 7
  %v25 = vsub.s32 0, %v24
  %v26 = vrot.slane %v21, %v25
  %v30 = vunpack.c.l.b16 %v15
  %v31 = vunpack.c.l.b16 %v16
  %v32 = vpack.c.b16 %v31, %v30
  %v37 = vunpack.c.l.b16 %v17
  %v38 = vunpack.c.l.b16 %v18
  %v39 = vunpack.c.l.b16 %v19
  %v40 = vunpack.c.l.b16 %v20
  %v41 = vpack.c.b16 %v38, %v37
  %v42 = vpack.c.b16 %v40, %v39
  %vm45 = vcmask 261120
  %v47 = vsel %vm45, %v32, 0
  %49 = vmatprep.subr.bf16.mxu0 0
  %50 = vmatpush1.bf16.msra.mxu0 %v41
  %51 = vmatprep.subr.bf16.mxu0 0
  %52 = vmatpush1.bf16.msra.mxu0 %v42
  %53 = vmatprep.subr.bf16.mxu0 0
  %54 = vmatpush1.bf16.msra.mxu0 0
  %55 = vmatprep.subr.bf16.mxu0 0
  %56 = vmatpush1.bf16.msra.mxu0 0
  %57 = vmatprep.subr.bf16.mxu0 0
  %58 = vmatpush1.bf16.msra.mxu0 0
  %59 = vmatprep.subr.bf16.mxu0 0
  %60 = vmatpush1.bf16.msra.mxu0 0
  %61 = vmatprep.subr.bf16.mxu0 0
  %62 = vmatpush1.bf16.msra.mxu0 0
  %63 = vmatprep.subr.bf16.mxu0 0
  %64 = vmatpush1.bf16.msra.mxu0 0
  %65 = vmatprep.subr.bf16.mxu0 0
  %66 = vmatpush1.bf16.msra.mxu0 0
  %67 = vmatprep.subr.bf16.mxu0 0
  %68 = vmatpush1.bf16.msra.mxu0 0
  %69 = vmatprep.subr.bf16.mxu0 0
  %70 = vmatpush1.bf16.msra.mxu0 0
  %71 = vmatprep.subr.bf16.mxu0 0
  %72 = vmatpush1.bf16.msra.mxu0 0
  %73 = vmatprep.subr.bf16.mxu0 0
  %74 = vmatpush1.bf16.msra.mxu0 0
  %75 = vmatprep.subr.bf16.mxu0 0
  %76 = vmatpush1.bf16.msra.mxu0 0
  %77 = vmatprep.subr.bf16.mxu0 0
  %78 = vmatpush1.bf16.msra.mxu0 0
  %79 = vmatprep.subr.bf16.mxu0 0
  %80 = vmatpush1.bf16.msra.mxu0 0
  %81 = vmatprep.mubr.bf16.mxu0 0
  %82 = vmatmul.mubr.bf16.gmra.mrb[0].mxu0 %v47
  %v83 = vpop.f32.mrb[0].mxu0
  %v84 = vadd.f32 %v26, %v83
  %v85 = vpop.f32.mrb[0].mxu0
  %v86 = vpop.f32.mrb[0].mxu0
  %v87 = vadd.f32 %v26, %v86
  %v88 = vpop.f32.mrb[0].mxu0
  %89 = vdwg.mxu0
  %v90 = vpack.c.bf16 %v87, %v84
  %v92 = vunpack.c.l.b16 %v90
  %v93 = vunpack.c.h.b16 %v90
  %v94 = vpack.c.b16 %v92, %v92
  %v95 = vpack.c.b16 %v93, %v93
  %vm98 = vcmask 519168
  %99 = vst.msk [vmem:[%s3] sm:$0xf] %vm98, %v94
  %100 = vst.msk [vmem:[%s3 + $0x4] sm:$0xf] %vm98, %v95
  // Predicated region
  $region14: #{cgcnn_forward.5} parent=0 // pred_check
    _
  $region15: #{cgcnn_forward.5} parent=0 // pred_check_branch
    %102 = sbr.rel (0) target = $region17
  $region16: #{cgcnn_forward.5} parent=0 // pred_region
    _
  $region17: #{cgcnn_forward.5} parent=0 // pred_fallthru
    _
  // Predicated region
  $region18: #{cgcnn_forward.5} parent=0 // pred_check
    _
  $region19: #{cgcnn_forward.5} parent=0 // pred_check_branch
    %104 = sbr.rel (0) target = $region21
  $region20: #{cgcnn_forward.5} parent=0 // pred_region
    _
  $region21: #{cgcnn_forward.5} parent=0 // pred_fallthru
    _

// kernel: cgcnn_forward.6
$region0: #{cgcnn_forward.6}
  #allocation0 [shape = 'u32[]', space=smem, size = 0x4, offset = 0x4, fixed_abs, tag = 'smem constant byte address 0x4 - core index']
  #allocation1 [shape = 'u32[144,128]{1,0:T(1,128)}', space=vmem, size = 0x12000, scoped, tag = 'internal scratch']
  %s0 = inlined_call_operand.vmem [shape: bf16[16,64], index: 0, kind: input, shape index: {}]
  %s1 = inlined_call_operand.vmem [shape: bf16[8,16,80], index: 1, kind: input, shape index: {}]
  %s2 = inlined_call_operand.vmem [shape: bf16[64,128], index: 2, kind: input, shape index: {}]
  %s3 = inlined_call_operand.vmem [shape: bf16[80,128], index: 3, kind: input, shape index: {}]
  %s4 = inlined_call_operand.vmem [shape: f32[1,128], index: 4, kind: input, shape index: {}]
  %s5 = inlined_call_operand.vmem [shape: f32[1,64], index: 5, kind: input, shape index: {}]
  %s6 = inlined_call_operand.vmem [shape: f32[1,64], index: 6, kind: input, shape index: {}]
  %s7 = inlined_call_operand.vmem [shape: bf16[16,64], index: 7, kind: output, shape index: {}]
  %s8 = sld [smem:[#allocation0]]
  $region38: #{cgcnn_forward.6} parent=0
    _
  %s10 = ssub.s32 1, %s8
  %s11 = scalar_select 0, %s10, %s8
  // Predicated region
  $region2: #{cgcnn_forward.6} parent=0 // pred_check
    _
  $region3: #{cgcnn_forward.6} parent=0 // pred_check_branch
    %13 = sbr.rel (0) target = $region5
  $region4: #{cgcnn_forward.6} parent=0 // pred_region
    _
  $region5: #{cgcnn_forward.6} parent=0 // pred_fallthru
    _
  // Predicated region
  $region6: #{cgcnn_forward.6} parent=0 // pred_check
    _
  $region7: #{cgcnn_forward.6} parent=0 // pred_check_branch
    %15 = sbr.rel (0) target = $region9
  $region8: #{cgcnn_forward.6} parent=0 // pred_region
    _
  $region9: #{cgcnn_forward.6} parent=0 // pred_fallthru
    _
  // Predicated region
  $region10: #{cgcnn_forward.6} parent=0 // pred_check
    _
  $region11: #{cgcnn_forward.6} parent=0 // pred_check_branch
    %17 = sbr.rel (0) target = $region13
  $region12: #{cgcnn_forward.6} parent=0 // pred_region
    _
  $region13: #{cgcnn_forward.6} parent=0 // pred_fallthru
    _
  // Predicated region
  $region14: #{cgcnn_forward.6} parent=0 // pred_check
    _
  $region15: #{cgcnn_forward.6} parent=0 // pred_check_branch
    %19 = sbr.rel (0) target = $region17
  $region16: #{cgcnn_forward.6} parent=0 // pred_region
    _
  $region17: #{cgcnn_forward.6} parent=0 // pred_fallthru
    _
  // Predicated region
  $region18: #{cgcnn_forward.6} parent=0 // pred_check
    _
  $region19: #{cgcnn_forward.6} parent=0 // pred_check_branch
    %21 = sbr.rel (0) target = $region21
  $region20: #{cgcnn_forward.6} parent=0 // pred_region
    _
  $region21: #{cgcnn_forward.6} parent=0 // pred_fallthru
    _
  // Predicated region
  $region22: #{cgcnn_forward.6} parent=0 // pred_check
    _
  $region23: #{cgcnn_forward.6} parent=0 // pred_check_branch
    %23 = sbr.rel (0) target = $region25
  $region24: #{cgcnn_forward.6} parent=0 // pred_region
    _
  $region25: #{cgcnn_forward.6} parent=0 // pred_fallthru
    _
  // Predicated region
  $region26: #{cgcnn_forward.6} parent=0 // pred_check
    _
  $region27: #{cgcnn_forward.6} parent=0 // pred_check_branch
    %25 = sbr.rel (0) target = $region29
  $region28: #{cgcnn_forward.6} parent=0 // pred_region
    _
  $region29: #{cgcnn_forward.6} parent=0 // pred_fallthru
    _
  %v27 = vld [vmem:[%s0] sm:$0xf]
  %v28 = vld [vmem:[%s0 + $0x4] sm:$0xf]
  %v29 = vld [vmem:[%s2] sm:$0xf]
  %v30 = vld [vmem:[%s2 + $0x4] sm:$0xf]
  %v31 = vld [vmem:[%s2 + $0x8] sm:$0xf]
  %v32 = vld [vmem:[%s2 + $0xc] sm:$0xf]
  %v33 = vld [vmem:[%s2 + $0x10] sm:$0xf]
  %v34 = vld [vmem:[%s2 + $0x14] sm:$0xf]
  %v35 = vld [vmem:[%s2 + $0x18] sm:$0xf]
  %v36 = vld [vmem:[%s2 + $0x1c] sm:$0xf]
  %v37 = vld [vmem:[%s4] sm:$0x1]
  %v39 = vlaneseq
  %v40 = vshrl.u32 %v39, 7
  %v41 = vsub.s32 0, %v40
  %v42 = vrot.slane %v37, %v41
  %v46 = vunpack.c.l.b16 %v27
  %v47 = vunpack.c.l.b16 %v28
  %v48 = vpack.c.b16 %v47, %v46
  %v57 = vunpack.c.l.b16 %v29
  %v58 = vunpack.c.l.b16 %v30
  %v59 = vunpack.c.l.b16 %v31
  %v60 = vunpack.c.l.b16 %v32
  %v61 = vunpack.c.l.b16 %v33
  %v62 = vunpack.c.l.b16 %v34
  %v63 = vunpack.c.l.b16 %v35
  %v64 = vunpack.c.l.b16 %v36
  %v65 = vpack.c.b16 %v58, %v57
  %v66 = vpack.c.b16 %v60, %v59
  %v67 = vpack.c.b16 %v62, %v61
  %v68 = vpack.c.b16 %v64, %v63
  %vm73 = vcmask 523264
  %v75 = vsel %vm73, %v48, 0
  %77 = vmatprep.subr.bf16.mxu0 0
  %78 = vmatpush1.bf16.msra.mxu0 %v65
  %79 = vmatprep.subr.bf16.mxu0 0
  %80 = vmatpush1.bf16.msra.mxu0 %v66
  %81 = vmatprep.subr.bf16.mxu0 0
  %82 = vmatpush1.bf16.msra.mxu0 %v67
  %83 = vmatprep.subr.bf16.mxu0 0
  %84 = vmatpush1.bf16.msra.mxu0 %v68
  %85 = vmatprep.subr.bf16.mxu0 0
  %86 = vmatpush1.bf16.msra.mxu0 0
  %87 = vmatprep.subr.bf16.mxu0 0
  %88 = vmatpush1.bf16.msra.mxu0 0
  %89 = vmatprep.subr.bf16.mxu0 0
  %90 = vmatpush1.bf16.msra.mxu0 0
  %91 = vmatprep.subr.bf16.mxu0 0
  %92 = vmatpush1.bf16.msra.mxu0 0
  %93 = vmatprep.subr.bf16.mxu0 0
  %94 = vmatpush1.bf16.msra.mxu0 0
  %95 = vmatprep.subr.bf16.mxu0 0
  %96 = vmatpush1.bf16.msra.mxu0 0
  %97 = vmatprep.subr.bf16.mxu0 0
  %98 = vmatpush1.bf16.msra.mxu0 0
  %99 = vmatprep.subr.bf16.mxu0 0
  %100 = vmatpush1.bf16.msra.mxu0 0
  %101 = vmatprep.subr.bf16.mxu0 0
  %102 = vmatpush1.bf16.msra.mxu0 0
  %103 = vmatprep.subr.bf16.mxu0 0
  %104 = vmatpush1.bf16.msra.mxu0 0
  %105 = vmatprep.subr.bf16.mxu0 0
  %106 = vmatpush1.bf16.msra.mxu0 0
  %107 = vmatprep.subr.bf16.mxu0 0
  %108 = vmatpush1.bf16.msra.mxu0 0
  %109 = vmatprep.mubr.bf16.mxu0 0
  %110 = vmatmul.mubr.bf16.gmra.mrb[0].mxu0 %v75
  %v111 = vpop.f32.mrb[0].mxu0
  %v112 = vadd.f32 %v42, %v111
  %v113 = vpop.f32.mrb[0].mxu0
  %v114 = vpop.f32.mrb[0].mxu0
  %v115 = vadd.f32 %v42, %v114
  %v116 = vpop.f32.mrb[0].mxu0
  %117 = vdwg.mxu0
  %v118 = vld [vmem:[%s1] sm:$0xf]
  %v119 = vld [vmem:[%s1 + $0x4] sm:$0xf]
  %v120 = vld [vmem:[%s1 + $0x8] sm:$0xf]
  %v121 = vld [vmem:[%s1 + $0xc] sm:$0xf]
  %v122 = vld [vmem:[%s1 + $0x10] sm:$0xf]
  %v123 = vld [vmem:[%s1 + $0x14] sm:$0xf]
  %v124 = vld [vmem:[%s1 + $0x18] sm:$0xf]
  %v125 = vld [vmem:[%s1 + $0x1c] sm:$0xf]
  %v126 = vld [vmem:[%s1 + $0x20] sm:$0xf]
  %v127 = vld [vmem:[%s1 + $0x24] sm:$0xf]
  %v128 = vld [vmem:[%s1 + $0x28] sm:$0xf]
  %v129 = vld [vmem:[%s1 + $0x2c] sm:$0xf]
  %v130 = vld [vmem:[%s1 + $0x30] sm:$0xf]
  %v131 = vld [vmem:[%s1 + $0x34] sm:$0xf]
  %v132 = vld [vmem:[%s1 + $0x38] sm:$0xf]
  %v133 = vld [vmem:[%s1 + $0x3c] sm:$0xf]
  %v134 = vld [vmem:[%s3] sm:$0xf]
  %v135 = vld [vmem:[%s3 + $0x4] sm:$0xf]
  %v136 = vld [vmem:[%s3 + $0x8] sm:$0xf]
  %v137 = vld [vmem:[%s3 + $0xc] sm:$0xf]
  %v138 = vld [vmem:[%s3 + $0x10] sm:$0xf]
  %v139 = vld [vmem:[%s3 + $0x14] sm:$0xf]
  %v140 = vld [vmem:[%s3 + $0x18] sm:$0xf]
  %v141 = vld [vmem:[%s3 + $0x1c] sm:$0xf]
  %v142 = vld [vmem:[%s3 + $0x20] sm:$0xf]
  %v143 = vld [vmem:[%s3 + $0x24] sm:$0xf]
  %v160 = vunpack.c.l.b16 %v118
  %v161 = vunpack.c.l.b16 %v119
  %v162 = vunpack.c.l.b16 %v120
  %v163 = vunpack.c.l.b16 %v121
  %v164 = vunpack.c.l.b16 %v122
  %v165 = vunpack.c.l.b16 %v123
  %v166 = vunpack.c.l.b16 %v124
  %v167 = vunpack.c.l.b16 %v125
  %v168 = vunpack.c.l.b16 %v126
  %v169 = vunpack.c.l.b16 %v127
  %v170 = vunpack.c.l.b16 %v128
  %v171 = vunpack.c.l.b16 %v129
  %v172 = vunpack.c.l.b16 %v130
  %v173 = vunpack.c.l.b16 %v131
  %v174 = vunpack.c.l.b16 %v132
  %v175 = vunpack.c.l.b16 %v133
  %v176 = vpack.c.b16 %v161, %v160
  %v177 = vpack.c.b16 %v163, %v162
  %v178 = vpack.c.b16 %v165, %v164
  %v179 = vpack.c.b16 %v167, %v166
  %v180 = vpack.c.b16 %v169, %v168
  %v181 = vpack.c.b16 %v171, %v170
  %v182 = vpack.c.b16 %v173, %v172
  %v183 = vpack.c.b16 %v175, %v174
  %v194 = vunpack.c.l.b16 %v134
  %v195 = vunpack.c.l.b16 %v135
  %v196 = vunpack.c.l.b16 %v136
  %v197 = vunpack.c.l.b16 %v137
  %v198 = vunpack.c.l.b16 %v138
  %v199 = vunpack.c.l.b16 %v139
  %v200 = vunpack.c.l.b16 %v140
  %v201 = vunpack.c.l.b16 %v141
  %v202 = vunpack.c.l.b16 %v142
  %v203 = vunpack.c.l.b16 %v143
  %v204 = vpack.c.b16 %v195, %v194
  %v205 = vpack.c.b16 %v197, %v196
  %v206 = vpack.c.b16 %v199, %v198
  %v207 = vpack.c.b16 %v201, %v200
  %v208 = vpack.c.b16 %v203, %v202
  %vm214 = vcmask 654336
  %v216 = vsel %vm214, %v176, 0
  %v219 = vsel %vm214, %v177, 0
  %v222 = vsel %vm214, %v178, 0
  %v225 = vsel %vm214, %v179, 0
  %v228 = vsel %vm214, %v180, 0
  %v231 = vsel %vm214, %v181, 0
  %v234 = vsel %vm214, %v182, 0
  %v237 = vsel %vm214, %v183, 0
  %239 = vmatprep.subr.bf16.mxu0 0
  %240 = vmatpush1.bf16.msra.mxu0 %v204
  %241 = vmatprep.subr.bf16.mxu0 0
  %242 = vmatpush1.bf16.msra.mxu0 %v205
  %243 = vmatprep.subr.bf16.mxu0 0
  %244 = vmatpush1.bf16.msra.mxu0 %v206
  %245 = vmatprep.subr.bf16.mxu0 0
  %246 = vmatpush1.bf16.msra.mxu0 %v207
  %247 = vmatprep.subr.bf16.mxu0 0
  %248 = vmatpush1.bf16.msra.mxu0 %v208
  %249 = vmatprep.subr.bf16.mxu0 0
  %250 = vmatpush1.bf16.msra.mxu0 0
  %251 = vmatprep.subr.bf16.mxu0 0
  %252 = vmatpush1.bf16.msra.mxu0 0
  %253 = vmatprep.subr.bf16.mxu0 0
  %254 = vmatpush1.bf16.msra.mxu0 0
  %255 = vmatprep.subr.bf16.mxu0 0
  %256 = vmatpush1.bf16.msra.mxu0 0
  %257 = vmatprep.subr.bf16.mxu0 0
  %258 = vmatpush1.bf16.msra.mxu0 0
  %259 = vmatprep.subr.bf16.mxu0 0
  %260 = vmatpush1.bf16.msra.mxu0 0
  %261 = vmatprep.subr.bf16.mxu0 0
  %262 = vmatpush1.bf16.msra.mxu0 0
  %263 = vmatprep.subr.bf16.mxu0 0
  %264 = vmatpush1.bf16.msra.mxu0 0
  %265 = vmatprep.subr.bf16.mxu0 0
  %266 = vmatpush1.bf16.msra.mxu0 0
  %267 = vmatprep.subr.bf16.mxu0 0
  %268 = vmatpush1.bf16.msra.mxu0 0
  %269 = vmatprep.subr.bf16.mxu0 0
  %270 = vmatpush1.bf16.msra.mxu0 0
  %271 = vmatprep.mubr.bf16.mxu0 0
  %272 = vmatmul.mubr.bf16.gmra.mrb[0].mxu0 %v216
  %v273 = vpop.f32.mrb[0].mxu0
  %v274 = vadd.f32 0.0, %v273
  %v275 = vpop.f32.mrb[0].mxu0
  %v276 = vpop.f32.mrb[0].mxu0
  %v277 = vadd.f32 0.0, %v276
  %v278 = vpop.f32.mrb[0].mxu0
  %279 = vmatprep.mubr.bf16.mxu0 0
  %280 = vmatmul.mubr.bf16.gmra.mrb[0].mxu0 %v219
  %v281 = vpop.f32.mrb[0].mxu0
  %v282 = vadd.f32 0.0, %v281
  %v283 = vpop.f32.mrb[0].mxu0
  %v284 = vpop.f32.mrb[0].mxu0
  %v285 = vadd.f32 0.0, %v284
  %v286 = vpop.f32.mrb[0].mxu0
  %287 = vmatprep.mubr.bf16.mxu0 0
  %288 = vmatmul.mubr.bf16.gmra.mrb[0].mxu0 %v222
  %v289 = vpop.f32.mrb[0].mxu0
  %v290 = vadd.f32 0.0, %v289
  %v291 = vpop.f32.mrb[0].mxu0
  %v292 = vpop.f32.mrb[0].mxu0
  %v293 = vadd.f32 0.0, %v292
  %v294 = vpop.f32.mrb[0].mxu0
  %295 = vmatprep.mubr.bf16.mxu0 0
  %296 = vmatmul.mubr.bf16.gmra.mrb[0].mxu0 %v225
  %v297 = vpop.f32.mrb[0].mxu0
  %v298 = vadd.f32 0.0, %v297
  %v299 = vpop.f32.mrb[0].mxu0
  %v300 = vpop.f32.mrb[0].mxu0
  %v301 = vadd.f32 0.0, %v300
  %v302 = vpop.f32.mrb[0].mxu0
  %303 = vmatprep.mubr.bf16.mxu0 0
  %304 = vmatmul.mubr.bf16.gmra.mrb[0].mxu0 %v228
  %v305 = vpop.f32.mrb[0].mxu0
  %v306 = vadd.f32 0.0, %v305
  %v307 = vpop.f32.mrb[0].mxu0
  %v308 = vpop.f32.mrb[0].mxu0
  %v309 = vadd.f32 0.0, %v308
  %v310 = vpop.f32.mrb[0].mxu0
  %311 = vmatprep.mubr.bf16.mxu0 0
  %312 = vmatmul.mubr.bf16.gmra.mrb[0].mxu0 %v231
  %v313 = vpop.f32.mrb[0].mxu0
  %v314 = vadd.f32 0.0, %v313
  %v315 = vpop.f32.mrb[0].mxu0
  %v316 = vpop.f32.mrb[0].mxu0
  %v317 = vadd.f32 0.0, %v316
  %v318 = vpop.f32.mrb[0].mxu0
  %319 = vmatprep.mubr.bf16.mxu0 0
  %320 = vmatmul.mubr.bf16.gmra.mrb[0].mxu0 %v234
  %v321 = vpop.f32.mrb[0].mxu0
  %v322 = vadd.f32 0.0, %v321
  %v323 = vpop.f32.mrb[0].mxu0
  %v324 = vpop.f32.mrb[0].mxu0
  %v325 = vadd.f32 0.0, %v324
  %v326 = vpop.f32.mrb[0].mxu0
  %327 = vmatprep.mubr.bf16.mxu0 0
  %328 = vmatmul.mubr.bf16.gmra.mrb[0].mxu0 %v237
  %v329 = vpop.f32.mrb[0].mxu0
  %v330 = vadd.f32 0.0, %v329
  %v331 = vpop.f32.mrb[0].mxu0
  %v332 = vpop.f32.mrb[0].mxu0
  %v333 = vadd.f32 0.0, %v332
  %v334 = vpop.f32.mrb[0].mxu0
  %335 = vdwg.mxu0
  %v336 = vadd.f32 %v274, %v112
  %v337 = vadd.f32 %v277, %v115
  %v338 = vadd.f32 %v282, %v112
  %v339 = vadd.f32 %v285, %v115
  %v340 = vadd.f32 %v290, %v112
  %v341 = vadd.f32 %v293, %v115
  %v342 = vadd.f32 %v298, %v112
  %v343 = vadd.f32 %v301, %v115
  %v344 = vadd.f32 %v306, %v112
  %v345 = vadd.f32 %v309, %v115
  %v346 = vadd.f32 %v314, %v112
  %v347 = vadd.f32 %v317, %v115
  %v348 = vadd.f32 %v322, %v112
  %v349 = vadd.f32 %v325, %v115
  %v350 = vadd.f32 %v330, %v112
  %v351 = vadd.f32 %v333, %v115
  %v352 = vsub.f32 0.0, %v336
  %v353 = vsub.f32 0.0, %v337
  %v354 = vsub.f32 0.0, %v338
  %v355 = vsub.f32 0.0, %v339
  %v356 = vsub.f32 0.0, %v340
  %v357 = vsub.f32 0.0, %v341
  %v358 = vsub.f32 0.0, %v342
  %v359 = vsub.f32 0.0, %v343
  %v360 = vsub.f32 0.0, %v344
  %v361 = vsub.f32 0.0, %v345
  %v362 = vsub.f32 0.0, %v346
  %v363 = vsub.f32 0.0, %v347
  %v364 = vsub.f32 0.0, %v348
  %v365 = vsub.f32 0.0, %v349
  %v366 = vsub.f32 0.0, %v350
  %v367 = vsub.f32 0.0, %v351
  %v368 = vmul.f32 %v352, 1.442695
  %v369 = vpow.pop %v368
  %v370 = vmul.f32 %v353, 1.442695
  %v371 = vpow.pop %v370
  %v372 = vmul.f32 %v354, 1.442695
  %v373 = vpow.pop %v372
  %v374 = vmul.f32 %v355, 1.442695
  %v375 = vpow.pop %v374
  %v376 = vmul.f32 %v356, 1.442695
  %v377 = vpow.pop %v376
  %v378 = vmul.f32 %v357, 1.442695
  %v379 = vpow.pop %v378
  %v380 = vmul.f32 %v358, 1.442695
  %v381 = vpow.pop %v380
  %v382 = vmul.f32 %v359, 1.442695
  %v383 = vpow.pop %v382
  %v384 = vmul.f32 %v360, 1.442695
  %v385 = vpow.pop %v384
  %v386 = vmul.f32 %v361, 1.442695
  %v387 = vpow.pop %v386
  %v388 = vmul.f32 %v362, 1.442695
  %v389 = vpow.pop %v388
  %v390 = vmul.f32 %v363, 1.442695
  %v391 = vpow.pop %v390
  %v392 = vmul.f32 %v364, 1.442695
  %v393 = vpow.pop %v392
  %v394 = vmul.f32 %v365, 1.442695
  %v395 = vpow.pop %v394
  %v396 = vmul.f32 %v366, 1.442695
  %v397 = vpow.pop %v396
  %v398 = vmul.f32 %v367, 1.442695
  %v399 = vpow.pop %v398
  %v400 = vadd.f32 %v369, 1.0
  %v401 = vadd.f32 %v371, 1.0
  %v402 = vadd.f32 %v373, 1.0
  %v403 = vadd.f32 %v375, 1.0
  %v404 = vadd.f32 %v377, 1.0
  %v405 = vadd.f32 %v379, 1.0
  %v406 = vadd.f32 %v381, 1.0
  %v407 = vadd.f32 %v383, 1.0
  %v408 = vadd.f32 %v385, 1.0
  %v409 = vadd.f32 %v387, 1.0
  %v410 = vadd.f32 %v389, 1.0
  %v411 = vadd.f32 %v391, 1.0
  %v412 = vadd.f32 %v393, 1.0
  %v413 = vadd.f32 %v395, 1.0
  %v414 = vadd.f32 %v397, 1.0
  %v415 = vadd.f32 %v399, 1.0
  %v416 = vrcp.pop %v400
  %v417 = vmul.f32 1.0, %v416
  %v418 = vrcp.pop %v401
  %v419 = vmul.f32 1.0, %v418
  %v420 = vrcp.pop %v402
  %v421 = vmul.f32 1.0, %v420
  %v422 = vrcp.pop %v403
  %v423 = vmul.f32 1.0, %v422
  %v424 = vrcp.pop %v404
  %v425 = vmul.f32 1.0, %v424
  %v426 = vrcp.pop %v405
  %v427 = vmul.f32 1.0, %v426
  %v428 = vrcp.pop %v406
  %v429 = vmul.f32 1.0, %v428
  %v430 = vrcp.pop %v407
  %v431 = vmul.f32 1.0, %v430
  %v432 = vrcp.pop %v408
  %v433 = vmul.f32 1.0, %v432
  %v434 = vrcp.pop %v409
  %v435 = vmul.f32 1.0, %v434
  %v436 = vrcp.pop %v410
  %v437 = vmul.f32 1.0, %v436
  %v438 = vrcp.pop %v411
  %v439 = vmul.f32 1.0, %v438
  %v440 = vrcp.pop %v412
  %v441 = vmul.f32 1.0, %v440
  %v442 = vrcp.pop %v413
  %v443 = vmul.f32 1.0, %v442
  %v444 = vrcp.pop %v414
  %v445 = vmul.f32 1.0, %v444
  %v446 = vrcp.pop %v415
  %v447 = vmul.f32 1.0, %v446
  %v448 = vtanh.pop %v336
  %v449 = vtanh.pop %v337
  %v450 = vtanh.pop %v338
  %v451 = vtanh.pop %v339
  %v452 = vtanh.pop %v340
  %v453 = vtanh.pop %v341
  %v454 = vtanh.pop %v342
  %v455 = vtanh.pop %v343
  %v456 = vtanh.pop %v344
  %v457 = vtanh.pop %v345
  %v458 = vtanh.pop %v346
  %v459 = vtanh.pop %v347
  %v460 = vtanh.pop %v348
  %v461 = vtanh.pop %v349
  %v462 = vtanh.pop %v350
  %v463 = vtanh.pop %v351
  %480 = vrot.lane.b32.xlu0 %v448, 64
  %v481 = vpop.permute.xlu0 %480
  %482 = vrot.lane.b32.xlu0 %v449, 64
  %v483 = vpop.permute.xlu0 %482
  %484 = vrot.lane.b32.xlu0 %v450, 64
  %v485 = vpop.permute.xlu0 %484
  %486 = vrot.lane.b32.xlu0 %v451, 64
  %v487 = vpop.permute.xlu0 %486
  %488 = vrot.lane.b32.xlu0 %v452, 64
  %v489 = vpop.permute.xlu0 %488
  %490 = vrot.lane.b32.xlu0 %v453, 64
  %v491 = vpop.permute.xlu0 %490
  %492 = vrot.lane.b32.xlu0 %v454, 64
  %v493 = vpop.permute.xlu0 %492
  %494 = vrot.lane.b32.xlu0 %v455, 64
  %v495 = vpop.permute.xlu0 %494
  %496 = vrot.lane.b32.xlu0 %v456, 64
  %v497 = vpop.permute.xlu0 %496
  %498 = vrot.lane.b32.xlu0 %v457, 64
  %v499 = vpop.permute.xlu0 %498
  %500 = vrot.lane.b32.xlu0 %v458, 64
  %v501 = vpop.permute.xlu0 %500
  %502 = vrot.lane.b32.xlu0 %v459, 64
  %v503 = vpop.permute.xlu0 %502
  %504 = vrot.lane.b32.xlu0 %v460, 64
  %v505 = vpop.permute.xlu0 %504
  %506 = vrot.lane.b32.xlu0 %v461, 64
  %v507 = vpop.permute.xlu0 %506
  %508 = vrot.lane.b32.xlu0 %v462, 64
  %v509 = vpop.permute.xlu0 %508
  %510 = vrot.lane.b32.xlu0 %v463, 64
  %v511 = vpop.permute.xlu0 %510
  %v528 = vmul.f32 %v417, %v481
  %v529 = vmul.f32 %v419, %v483
  %v530 = vmul.f32 %v421, %v485
  %v531 = vmul.f32 %v423, %v487
  %v532 = vmul.f32 %v425, %v489
  %v533 = vmul.f32 %v427, %v491
  %v534 = vmul.f32 %v429, %v493
  %v535 = vmul.f32 %v431, %v495
  %v536 = vmul.f32 %v433, %v497
  %v537 = vmul.f32 %v435, %v499
  %v538 = vmul.f32 %v437, %v501
  %v539 = vmul.f32 %v439, %v503
  %v540 = vmul.f32 %v441, %v505
  %v541 = vmul.f32 %v443, %v507
  %v542 = vmul.f32 %v445, %v509
  %v543 = vmul.f32 %v447, %v511
  %v544 = vsel %vm73, %v528, 0.0
  %v545 = vsel %vm73, %v530, 0.0
  %v546 = vadd.f32 %v544, %v545
  %v547 = vsel %vm73, %v532, 0.0
  %v548 = vadd.f32 %v546, %v547
  %v549 = vsel %vm73, %v534, 0.0
  %v550 = vadd.f32 %v548, %v549
  %v551 = vsel %vm73, %v536, 0.0
  %v552 = vadd.f32 %v550, %v551
  %v553 = vsel %vm73, %v538, 0.0
  %v554 = vadd.f32 %v552, %v553
  %v555 = vsel %vm73, %v540, 0.0
  %v556 = vadd.f32 %v554, %v555
  %v557 = vsel %vm73, %v542, 0.0
  %v558 = vadd.f32 %v556, %v557
  %v559 = vsel %vm73, %v529, 0.0
  %v560 = vsel %vm73, %v531, 0.0
  %v561 = vadd.f32 %v559, %v560
  %v562 = vsel %vm73, %v533, 0.0
  %v563 = vadd.f32 %v561, %v562
  %v564 = vsel %vm73, %v535, 0.0
  %v565 = vadd.f32 %v563, %v564
  %v566 = vsel %vm73, %v537, 0.0
  %v567 = vadd.f32 %v565, %v566
  %v568 = vsel %vm73, %v539, 0.0
  %v569 = vadd.f32 %v567, %v568
  %v570 = vsel %vm73, %v541, 0.0
  %v571 = vadd.f32 %v569, %v570
  %v572 = vsel %vm73, %v543, 0.0
  %v573 = vadd.f32 %v571, %v572
  %v574 = vld [vmem:[%s5] sm:$0x1]
  %v576 = vlaneseq
  %v577 = vshrl.u32 %v576, 7
  %v578 = vsub.s32 0, %v577
  %v579 = vrot.slane %v574, %v578
  %v581 = vmul.f32 %v558, %v579
  %v582 = vmul.f32 %v573, %v579
  %v583 = vld [vmem:[%s6] sm:$0x1]
  %v585 = vlaneseq
  %v586 = vshrl.u32 %v585, 7
  %v587 = vsub.s32 0, %v586
  %v588 = vrot.slane %v583, %v587
  %v590 = vadd.f32 %v581, %v588
  %v591 = vadd.f32 %v582, %v588
  %v592 = vunpack.c.l.bf16 %v27
  %v593 = vunpack.c.l.bf16 %v28
  %v594 = vadd.f32 %v592, %v590
  %v595 = vadd.f32 %v593, %v591
  %v596 = vtanh.pop %v594
  %v597 = vtanh.pop %v595
  %v598 = vpack.c.bf16 %v597, %v596
  %v600 = vunpack.c.l.b16 %v598
  %v601 = vunpack.c.h.b16 %v598
  %v602 = vpack.c.b16 %v600, %v600
  %v603 = vpack.c.b16 %v601, %v601
  %vm606 = vcmask 519168
  %607 = vst.msk [vmem:[%s7] sm:$0xf] %vm606, %v602
  %608 = vst.msk [vmem:[%s7 + $0x4] sm:$0xf] %vm606, %v603
  // Predicated region
  $region30: #{cgcnn_forward.6} parent=0 // pred_check
    _
  $region31: #{cgcnn_forward.6} parent=0 // pred_check_branch
    %610 = sbr.rel (0) target = $region33
  $region32: #{cgcnn_forward.6} parent=0 // pred_region
    _
  $region33: #{cgcnn_forward.6} parent=0 // pred_fallthru
    _
  // Predicated region
  $region34: #{cgcnn_forward.6} parent=0 // pred_check
    _
  $region35: #{cgcnn_forward.6} parent=0 // pred_check_branch
    %612 = sbr.rel (0) target = $region37
  $region36: #{cgcnn_forward.6} parent=0 // pred_region
    _
  $region37: #{cgcnn_forward.6} parent=0 // pred_fallthru
    _

// kernel: cgcnn_forward.9
$region0: #{cgcnn_forward.9}
  #allocation0 [shape = 'u32[]', space=smem, size = 0x4, offset = 0x4, fixed_abs, tag = 'smem constant byte address 0x4 - core index']
  #allocation1 [shape = 'u32[144,128]{1,0:T(1,128)}', space=vmem, size = 0x12000, scoped, tag = 'internal scratch']
  #allocation2 [shape = 'f32[1,1]{1,0:T(1,128)S(1)}', space=vmem, size = 0x200, scoped, tag = 'scoped memory for cgcnn_forward.9']
  %s0 = inlined_call_operand.vmem [shape: bf16[16,64], index: 0, kind: input, shape index: {}]
  %s1 = inlined_call_operand.vmem [shape: f32[2,16], index: 1, kind: input, shape index: {}]
  %s2 = inlined_call_operand.vmem [shape: f32[16,2], index: 2, kind: input, shape index: {}]
  %s3 = inlined_call_operand.vmem [shape: f32[64,64], index: 3, kind: input, shape index: {}]
  %s4 = inlined_call_operand.vmem [shape: f32[1,64], index: 4, kind: input, shape index: {}]
  %s5 = inlined_call_operand.vmem [shape: f32[64,128], index: 5, kind: input, shape index: {}]
  %s6 = inlined_call_operand.vmem [shape: f32[1,128], index: 6, kind: input, shape index: {}]
  %s7 = inlined_call_operand.vmem [shape: f32[1,128], index: 7, kind: input, shape index: {}]
  %s8 = inlined_call_operand.<no memory space> [shape: f32[1,1], index: 8, kind: input, shape index: {}]
  %s9 = inlined_call_operand.vmem [shape: f32[2,1], index: 9, kind: output, shape index: {}]
  %s10 = sld [smem:[#allocation0]]
  $region46: #{cgcnn_forward.9} parent=0
    _
  %s12 = ssub.s32 1, %s10
  %s13 = scalar_select 0, %s12, %s10
  %v14 = vstv %s8
  %15 = vst [vmem:[#allocation2] sm:$0x1] %v14
  // Predicated region
  $region2: #{cgcnn_forward.9} parent=0 // pred_check
    _
  $region3: #{cgcnn_forward.9} parent=0 // pred_check_branch
    %17 = sbr.rel (0) target = $region5
  $region4: #{cgcnn_forward.9} parent=0 // pred_region
    _
  $region5: #{cgcnn_forward.9} parent=0 // pred_fallthru
    _
  // Predicated region
  $region6: #{cgcnn_forward.9} parent=0 // pred_check
    _
  $region7: #{cgcnn_forward.9} parent=0 // pred_check_branch
    %19 = sbr.rel (0) target = $region9
  $region8: #{cgcnn_forward.9} parent=0 // pred_region
    _
  $region9: #{cgcnn_forward.9} parent=0 // pred_fallthru
    _
  // Predicated region
  $region10: #{cgcnn_forward.9} parent=0 // pred_check
    _
  $region11: #{cgcnn_forward.9} parent=0 // pred_check_branch
    %21 = sbr.rel (0) target = $region13
  $region12: #{cgcnn_forward.9} parent=0 // pred_region
    _
  $region13: #{cgcnn_forward.9} parent=0 // pred_fallthru
    _
  // Predicated region
  $region14: #{cgcnn_forward.9} parent=0 // pred_check
    _
  $region15: #{cgcnn_forward.9} parent=0 // pred_check_branch
    %23 = sbr.rel (0) target = $region17
  $region16: #{cgcnn_forward.9} parent=0 // pred_region
    _
  $region17: #{cgcnn_forward.9} parent=0 // pred_fallthru
    _
  // Predicated region
  $region18: #{cgcnn_forward.9} parent=0 // pred_check
    _
  $region19: #{cgcnn_forward.9} parent=0 // pred_check_branch
    %25 = sbr.rel (0) target = $region21
  $region20: #{cgcnn_forward.9} parent=0 // pred_region
    _
  $region21: #{cgcnn_forward.9} parent=0 // pred_fallthru
    _
  // Predicated region
  $region22: #{cgcnn_forward.9} parent=0 // pred_check
    _
  $region23: #{cgcnn_forward.9} parent=0 // pred_check_branch
    %27 = sbr.rel (0) target = $region25
  $region24: #{cgcnn_forward.9} parent=0 // pred_region
    _
  $region25: #{cgcnn_forward.9} parent=0 // pred_fallthru
    _
  // Predicated region
  $region26: #{cgcnn_forward.9} parent=0 // pred_check
    _
  $region27: #{cgcnn_forward.9} parent=0 // pred_check_branch
    %29 = sbr.rel (0) target = $region29
  $region28: #{cgcnn_forward.9} parent=0 // pred_region
    _
  $region29: #{cgcnn_forward.9} parent=0 // pred_fallthru
    _
  // Predicated region
  $region30: #{cgcnn_forward.9} parent=0 // pred_check
    _
  $region31: #{cgcnn_forward.9} parent=0 // pred_check_branch
    %31 = sbr.rel (0) target = $region33
  $region32: #{cgcnn_forward.9} parent=0 // pred_region
    _
  $region33: #{cgcnn_forward.9} parent=0 // pred_fallthru
    _
  // Predicated region
  $region34: #{cgcnn_forward.9} parent=0 // pred_check
    _
  $region35: #{cgcnn_forward.9} parent=0 // pred_check_branch
    %33 = sbr.rel (0) target = $region37
  $region36: #{cgcnn_forward.9} parent=0 // pred_region
    _
  $region37: #{cgcnn_forward.9} parent=0 // pred_fallthru
    _
  %v34 = vld [vmem:[%s0] sm:$0xf]
  %v35 = vld [vmem:[%s0 + $0x4] sm:$0xf]
  %v36 = vunpack.c.l.bf16 %v34
  %v37 = vunpack.c.l.bf16 %v35
  %v38 = vld [vmem:[%s1] sm:$0x3]
  %vm39 = vcmask 130048
  %v41 = vsel %vm39, %v38, 0
  %43 = vmatprep.subr.mxu0 0.0
  %44 = vmatpush1.msra.mxu0 %v36
  %45 = vmatprep.subr.mxu0 0.0
  %46 = vmatpush1.msra.mxu0 %v37
  %47 = vmatprep.subr.mxu0 0.0
  %48 = vmatpush1.msra.mxu0 0.0
  %49 = vmatprep.subr.mxu0 0.0
  %50 = vmatpush1.msra.mxu0 0.0
  %51 = vmatprep.subr.mxu0 0.0
  %52 = vmatpush1.msra.mxu0 0.0
  %53 = vmatprep.subr.mxu0 0.0
  %54 = vmatpush1.msra.mxu0 0.0
  %55 = vmatprep.subr.mxu0 0.0
  %56 = vmatpush1.msra.mxu0 0.0
  %57 = vmatprep.subr.mxu0 0.0
  %58 = vmatpush1.msra.mxu0 0.0
  %59 = vmatprep.subr.mxu0 0.0
  %60 = vmatpush1.msra.mxu0 0.0
  %61 = vmatprep.subr.mxu0 0.0
  %62 = vmatpush1.msra.mxu0 0.0
  %63 = vmatprep.subr.mxu0 0.0
  %64 = vmatpush1.msra.mxu0 0.0
  %65 = vmatprep.subr.mxu0 0.0
  %66 = vmatpush1.msra.mxu0 0.0
  %67 = vmatprep.subr.mxu0 0.0
  %68 = vmatpush1.msra.mxu0 0.0
  %69 = vmatprep.subr.mxu0 0.0
  %70 = vmatpush1.msra.mxu0 0.0
  %71 = vmatprep.subr.mxu0 0.0
  %72 = vmatpush1.msra.mxu0 0.0
  %73 = vmatprep.subr.mxu0 0.0
  %74 = vmatpush1.msra.mxu0 0.0
  %75 = vmatprep.subr.mxu0 0.0
  %76 = vmatpush1.msra.mxu0 0.0
  %77 = vmatprep.subr.mxu0 0.0
  %78 = vmatpush1.msra.mxu0 0.0
  %79 = vmatprep.subr.mxu0 0.0
  %80 = vmatpush1.msra.mxu0 0.0
  %81 = vmatprep.subr.mxu0 0.0
  %82 = vmatpush1.msra.mxu0 0.0
  %83 = vmatprep.subr.mxu0 0.0
  %84 = vmatpush1.msra.mxu0 0.0
  %85 = vmatprep.subr.mxu0 0.0
  %86 = vmatpush1.msra.mxu0 0.0
  %87 = vmatprep.subr.mxu0 0.0
  %88 = vmatpush1.msra.mxu0 0.0
  %89 = vmatprep.subr.mxu0 0.0
  %90 = vmatpush1.msra.mxu0 0.0
  %91 = vmatprep.subr.mxu0 0.0
  %92 = vmatpush1.msra.mxu0 0.0
  %93 = vmatprep.subr.mxu0 0.0
  %94 = vmatpush1.msra.mxu0 0.0
  %95 = vmatprep.subr.mxu0 0.0
  %96 = vmatpush1.msra.mxu0 0.0
  %97 = vmatprep.subr.mxu0 0.0
  %98 = vmatpush1.msra.mxu0 0.0
  %99 = vmatprep.subr.mxu0 0.0
  %100 = vmatpush1.msra.mxu0 0.0
  %101 = vmatprep.subr.mxu0 0.0
  %102 = vmatpush1.msra.mxu0 0.0
  %103 = vmatprep.subr.mxu0 0.0
  %104 = vmatpush1.msra.mxu0 0.0
  %105 = vmatprep.subr.mxu0 0.0
  %106 = vmatpush1.msra.mxu0 0.0
  %107 = vmatprep.mubr.f32.mxu0 0.0
  %108 = vmatmul.mubr.f32.gmra.mrb[0].mxu0 %v41
  %v109 = vpop.f32.mrb[0].mxu0
  %v110 = vadd.f32 0.0, %v109
  %v111 = vpop.f32.mrb[0].mxu0
  %112 = vdwg.mxu0
  %v113 = vld [vmem:[%s2] sm:$0xff]
  %v114 = vld [vmem:[%s2 + $0x8] sm:$0xff]
  %vm115 = vcmask 15360
  %v117 = vsel %vm115, %v113, 0
  %v120 = vsel %vm115, %v114, 0
  %vm122 = vcmask 1041408
  %v124 = vsel %vm122, %v110, 0
  %126 = vmatprep.subr.mxu0 0.0
  %127 = vmatpush1.msra.mxu0 %v124
  %128 = vmatprep.subr.mxu0 0.0
  %129 = vmatpush1.msra.mxu0 0.0
  %130 = vmatprep.subr.mxu0 0.0
  %131 = vmatpush1.msra.mxu0 0.0
  %132 = vmatprep.subr.mxu0 0.0
  %133 = vmatpush1.msra.mxu0 0.0
  %134 = vmatprep.subr.mxu0 0.0
  %135 = vmatpush1.msra.mxu0 0.0
  %136 = vmatprep.subr.mxu0 0.0
  %137 = vmatpush1.msra.mxu0 0.0
  %138 = vmatprep.subr.mxu0 0.0
  %139 = vmatpush1.msra.mxu0 0.0
  %140 = vmatprep.subr.mxu0 0.0
  %141 = vmatpush1.msra.mxu0 0.0
  %142 = vmatprep.subr.mxu0 0.0
  %143 = vmatpush1.msra.mxu0 0.0
  %144 = vmatprep.subr.mxu0 0.0
  %145 = vmatpush1.msra.mxu0 0.0
  %146 = vmatprep.subr.mxu0 0.0
  %147 = vmatpush1.msra.mxu0 0.0
  %148 = vmatprep.subr.mxu0 0.0
  %149 = vmatpush1.msra.mxu0 0.0
  %150 = vmatprep.subr.mxu0 0.0
  %151 = vmatpush1.msra.mxu0 0.0
  %152 = vmatprep.subr.mxu0 0.0
  %153 = vmatpush1.msra.mxu0 0.0
  %154 = vmatprep.subr.mxu0 0.0
  %155 = vmatpush1.msra.mxu0 0.0
  %156 = vmatprep.subr.mxu0 0.0
  %157 = vmatpush1.msra.mxu0 0.0
  %158 = vmatprep.subr.mxu0 0.0
  %159 = vmatpush1.msra.mxu0 0.0
  %160 = vmatprep.subr.mxu0 0.0
  %161 = vmatpush1.msra.mxu0 0.0
  %162 = vmatprep.subr.mxu0 0.0
  %163 = vmatpush1.msra.mxu0 0.0
  %164 = vmatprep.subr.mxu0 0.0
  %165 = vmatpush1.msra.mxu0 0.0
  %166 = vmatprep.subr.mxu0 0.0
  %167 = vmatpush1.msra.mxu0 0.0
  %168 = vmatprep.subr.mxu0 0.0
  %169 = vmatpush1.msra.mxu0 0.0
  %170 = vmatprep.subr.mxu0 0.0
  %171 = vmatpush1.msra.mxu0 0.0
  %172 = vmatprep.subr.mxu0 0.0
  %173 = vmatpush1.msra.mxu0 0.0
  %174 = vmatprep.subr.mxu0 0.0
  %175 = vmatpush1.msra.mxu0 0.0
  %176 = vmatprep.subr.mxu0 0.0
  %177 = vmatpush1.msra.mxu0 0.0
  %178 = vmatprep.subr.mxu0 0.0
  %179 = vmatpush1.msra.mxu0 0.0
  %180 = vmatprep.subr.mxu0 0.0
  %181 = vmatpush1.msra.mxu0 0.0
  %182 = vmatprep.subr.mxu0 0.0
  %183 = vmatpush1.msra.mxu0 0.0
  %184 = vmatprep.subr.mxu0 0.0
  %185 = vmatpush1.msra.mxu0 0.0
  %186 = vmatprep.subr.mxu0 0.0
  %187 = vmatpush1.msra.mxu0 0.0
  %188 = vmatprep.subr.mxu0 0.0
  %189 = vmatpush1.msra.mxu0 0.0
  %190 = vmatprep.mubr.f32.mxu0 0.0
  %191 = vmatmul.mubr.f32.gmra.mrb[0].mxu0 %v117
  %v192 = vpop.f32.mrb[0].mxu0
  %v193 = vadd.f32 0.0, %v192
  %v194 = vpop.f32.mrb[0].mxu0
  %195 = vmatprep.mubr.f32.mxu0 0.0
  %196 = vmatmul.mubr.f32.gmra.mrb[0].mxu0 %v120
  %v197 = vpop.f32.mrb[0].mxu0
  %v198 = vadd.f32 0.0, %v197
  %v199 = vpop.f32.mrb[0].mxu0
  %200 = vdwg.mxu0
  %v201 = vld [vmem:[%s3] sm:$0xff]
  %v202 = vld [vmem:[%s3 + $0x8] sm:$0xff]
  %v203 = vld [vmem:[%s3 + $0x10] sm:$0xff]
  %v204 = vld [vmem:[%s3 + $0x18] sm:$0xff]
  %v205 = vld [vmem:[%s3 + $0x20] sm:$0xff]
  %v206 = vld [vmem:[%s3 + $0x28] sm:$0xff]
  %v207 = vld [vmem:[%s3 + $0x30] sm:$0xff]
  %v208 = vld [vmem:[%s3 + $0x38] sm:$0xff]
  %v209 = vld [vmem:[%s4] sm:$0x1]
  %v211 = vlaneseq
  %v212 = vshrl.u32 %v211, 7
  %v213 = vsub.s32 0, %v212
  %v214 = vrot.slane %v209, %v213
  %vm216 = vcmask 523264
  %v218 = vsel %vm216, %v193, 0
  %v221 = vsel %vm216, %v198, 0
  %223 = vmatprep.subr.mxu0 0.0
  %224 = vmatpush1.msra.mxu0 %v201
  %225 = vmatprep.subr.mxu0 0.0
  %226 = vmatpush1.msra.mxu0 %v202
  %227 = vmatprep.subr.mxu0 0.0
  %228 = vmatpush1.msra.mxu0 %v203
  %229 = vmatprep.subr.mxu0 0.0
  %230 = vmatpush1.msra.mxu0 %v204
  %231 = vmatprep.subr.mxu0 0.0
  %232 = vmatpush1.msra.mxu0 %v205
  %233 = vmatprep.subr.mxu0 0.0
  %234 = vmatpush1.msra.mxu0 %v206
  %235 = vmatprep.subr.mxu0 0.0
  %236 = vmatpush1.msra.mxu0 %v207
  %237 = vmatprep.subr.mxu0 0.0
  %238 = vmatpush1.msra.mxu0 %v208
  %239 = vmatprep.subr.mxu0 0.0
  %240 = vmatpush1.msra.mxu0 0.0
  %241 = vmatprep.subr.mxu0 0.0
  %242 = vmatpush1.msra.mxu0 0.0
  %243 = vmatprep.subr.mxu0 0.0
  %244 = vmatpush1.msra.mxu0 0.0
  %245 = vmatprep.subr.mxu0 0.0
  %246 = vmatpush1.msra.mxu0 0.0
  %247 = vmatprep.subr.mxu0 0.0
  %248 = vmatpush1.msra.mxu0 0.0
  %249 = vmatprep.subr.mxu0 0.0
  %250 = vmatpush1.msra.mxu0 0.0
  %251 = vmatprep.subr.mxu0 0.0
  %252 = vmatpush1.msra.mxu0 0.0
  %253 = vmatprep.subr.mxu0 0.0
  %254 = vmatpush1.msra.mxu0 0.0
  %255 = vmatprep.subr.mxu0 0.0
  %256 = vmatpush1.msra.mxu0 0.0
  %257 = vmatprep.subr.mxu0 0.0
  %258 = vmatpush1.msra.mxu0 0.0
  %259 = vmatprep.subr.mxu0 0.0
  %260 = vmatpush1.msra.mxu0 0.0
  %261 = vmatprep.subr.mxu0 0.0
  %262 = vmatpush1.msra.mxu0 0.0
  %263 = vmatprep.subr.mxu0 0.0
  %264 = vmatpush1.msra.mxu0 0.0
  %265 = vmatprep.subr.mxu0 0.0
  %266 = vmatpush1.msra.mxu0 0.0
  %267 = vmatprep.subr.mxu0 0.0
  %268 = vmatpush1.msra.mxu0 0.0
  %269 = vmatprep.subr.mxu0 0.0
  %270 = vmatpush1.msra.mxu0 0.0
  %271 = vmatprep.subr.mxu0 0.0
  %272 = vmatpush1.msra.mxu0 0.0
  %273 = vmatprep.subr.mxu0 0.0
  %274 = vmatpush1.msra.mxu0 0.0
  %275 = vmatprep.subr.mxu0 0.0
  %276 = vmatpush1.msra.mxu0 0.0
  %277 = vmatprep.subr.mxu0 0.0
  %278 = vmatpush1.msra.mxu0 0.0
  %279 = vmatprep.subr.mxu0 0.0
  %280 = vmatpush1.msra.mxu0 0.0
  %281 = vmatprep.subr.mxu0 0.0
  %282 = vmatpush1.msra.mxu0 0.0
  %283 = vmatprep.subr.mxu0 0.0
  %284 = vmatpush1.msra.mxu0 0.0
  %285 = vmatprep.subr.mxu0 0.0
  %286 = vmatpush1.msra.mxu0 0.0
  %287 = vmatprep.mubr.f32.mxu0 0.0
  %288 = vmatmul.mubr.f32.gmra.mrb[0].mxu0 %v218
  %v289 = vpop.f32.mrb[0].mxu0
  %v290 = vadd.f32 %v214, %v289
  %v291 = vpop.f32.mrb[0].mxu0
  %292 = vmatprep.mubr.f32.mxu0 0.0
  %293 = vmatmul.mubr.f32.gmra.mrb[0].mxu0 %v221
  %v294 = vpop.f32.mrb[0].mxu0
  %v295 = vadd.f32 %v214, %v294
  %v296 = vpop.f32.mrb[0].mxu0
  %297 = vdwg.mxu0
  %v298 = vtanh.pop %v290
  %v299 = vtanh.pop %v295
  %v300 = vmul.f32 %v36, %v298
  %v301 = vmul.f32 %v37, %v299
  %v302 = vsel %vm216, %v300, 0.0
  %303 = vadd.xlane.f32.xlu0 %v302
  %v304 = vpop.xlane.xlu0 %303
  %v305 = vsel %vm216, %v301, 0.0
  %306 = vadd.xlane.f32.xlu0 %v305
  %v307 = vpop.xlane.xlu0 %306
  %v308 = vsub.f32 0.0, %v304
  %v309 = vsub.f32 0.0, %v307
  %v310 = vmul.f32 %v308, 1.442695
  %v311 = vpow.pop %v310
  %v312 = vmul.f32 %v309, 1.442695
  %v313 = vpow.pop %v312
  %v314 = vadd.f32 %v311, 1.0
  %v315 = vadd.f32 %v313, 1.0
  %v316 = vrcp.pop %v314
  %v317 = vmul.f32 1.0, %v316
  %v318 = vrcp.pop %v315
  %v319 = vmul.f32 1.0, %v318
  %v320 = vmul.f32 %v317, %v36
  %v321 = vmul.f32 %v319, %v37
  %322 = vmatprep.subr.mxu0 0.0
  %323 = vmatpush1.msra.mxu0 %v320
  %324 = vmatprep.subr.mxu0 0.0
  %325 = vmatpush1.msra.mxu0 %v321
  %326 = vmatprep.subr.mxu0 0.0
  %327 = vmatpush1.msra.mxu0 0.0
  %328 = vmatprep.subr.mxu0 0.0
  %329 = vmatpush1.msra.mxu0 0.0
  %330 = vmatprep.subr.mxu0 0.0
  %331 = vmatpush1.msra.mxu0 0.0
  %332 = vmatprep.subr.mxu0 0.0
  %333 = vmatpush1.msra.mxu0 0.0
  %334 = vmatprep.subr.mxu0 0.0
  %335 = vmatpush1.msra.mxu0 0.0
  %336 = vmatprep.subr.mxu0 0.0
  %337 = vmatpush1.msra.mxu0 0.0
  %338 = vmatprep.subr.mxu0 0.0
  %339 = vmatpush1.msra.mxu0 0.0
  %340 = vmatprep.subr.mxu0 0.0
  %341 = vmatpush1.msra.mxu0 0.0
  %342 = vmatprep.subr.mxu0 0.0
  %343 = vmatpush1.msra.mxu0 0.0
  %344 = vmatprep.subr.mxu0 0.0
  %345 = vmatpush1.msra.mxu0 0.0
  %346 = vmatprep.subr.mxu0 0.0
  %347 = vmatpush1.msra.mxu0 0.0
  %348 = vmatprep.subr.mxu0 0.0
  %349 = vmatpush1.msra.mxu0 0.0
  %350 = vmatprep.subr.mxu0 0.0
  %351 = vmatpush1.msra.mxu0 0.0
  %352 = vmatprep.subr.mxu0 0.0
  %353 = vmatpush1.msra.mxu0 0.0
  %354 = vmatprep.subr.mxu0 0.0
  %355 = vmatpush1.msra.mxu0 0.0
  %356 = vmatprep.subr.mxu0 0.0
  %357 = vmatpush1.msra.mxu0 0.0
  %358 = vmatprep.subr.mxu0 0.0
  %359 = vmatpush1.msra.mxu0 0.0
  %360 = vmatprep.subr.mxu0 0.0
  %361 = vmatpush1.msra.mxu0 0.0
  %362 = vmatprep.subr.mxu0 0.0
  %363 = vmatpush1.msra.mxu0 0.0
  %364 = vmatprep.subr.mxu0 0.0
  %365 = vmatpush1.msra.mxu0 0.0
  %366 = vmatprep.subr.mxu0 0.0
  %367 = vmatpush1.msra.mxu0 0.0
  %368 = vmatprep.subr.mxu0 0.0
  %369 = vmatpush1.msra.mxu0 0.0
  %370 = vmatprep.subr.mxu0 0.0
  %371 = vmatpush1.msra.mxu0 0.0
  %372 = vmatprep.subr.mxu0 0.0
  %373 = vmatpush1.msra.mxu0 0.0
  %374 = vmatprep.subr.mxu0 0.0
  %375 = vmatpush1.msra.mxu0 0.0
  %376 = vmatprep.subr.mxu0 0.0
  %377 = vmatpush1.msra.mxu0 0.0
  %378 = vmatprep.subr.mxu0 0.0
  %379 = vmatpush1.msra.mxu0 0.0
  %380 = vmatprep.subr.mxu0 0.0
  %381 = vmatpush1.msra.mxu0 0.0
  %382 = vmatprep.subr.mxu0 0.0
  %383 = vmatpush1.msra.mxu0 0.0
  %384 = vmatprep.subr.mxu0 0.0
  %385 = vmatpush1.msra.mxu0 0.0
  %386 = vmatprep.mubr.f32.mxu0 0.0
  %387 = vmatmul.mubr.f32.gmra.mrb[0].mxu0 %v41
  %v388 = vpop.f32.mrb[0].mxu0
  %v389 = vadd.f32 0.0, %v388
  %v390 = vpop.f32.mrb[0].mxu0
  %391 = vdwg.mxu0
  %v392 = vld [vmem:[%s5] sm:$0xff]
  %v393 = vld [vmem:[%s5 + $0x8] sm:$0xff]
  %v394 = vld [vmem:[%s5 + $0x10] sm:$0xff]
  %v395 = vld [vmem:[%s5 + $0x18] sm:$0xff]
  %v396 = vld [vmem:[%s5 + $0x20] sm:$0xff]
  %v397 = vld [vmem:[%s5 + $0x28] sm:$0xff]
  %v398 = vld [vmem:[%s5 + $0x30] sm:$0xff]
  %v399 = vld [vmem:[%s5 + $0x38] sm:$0xff]
  %v400 = vld [vmem:[%s6] sm:$0x1]
  %v402 = vlaneseq
  %v403 = vshrl.u32 %v402, 7
  %v404 = vsub.s32 0, %v403
  %v405 = vrot.slane %v400, %v404
  %v408 = vsel %vm216, %v389, 0
  %410 = vmatprep.subr.mxu0 0.0
  %411 = vmatpush1.msra.mxu0 %v392
  %412 = vmatprep.subr.mxu0 0.0
  %413 = vmatpush1.msra.mxu0 %v393
  %414 = vmatprep.subr.mxu0 0.0
  %415 = vmatpush1.msra.mxu0 %v394
  %416 = vmatprep.subr.mxu0 0.0
  %417 = vmatpush1.msra.mxu0 %v395
  %418 = vmatprep.subr.mxu0 0.0
  %419 = vmatpush1.msra.mxu0 %v396
  %420 = vmatprep.subr.mxu0 0.0
  %421 = vmatpush1.msra.mxu0 %v397
  %422 = vmatprep.subr.mxu0 0.0
  %423 = vmatpush1.msra.mxu0 %v398
  %424 = vmatprep.subr.mxu0 0.0
  %425 = vmatpush1.msra.mxu0 %v399
  %426 = vmatprep.subr.mxu0 0.0
  %427 = vmatpush1.msra.mxu0 0.0
  %428 = vmatprep.subr.mxu0 0.0
  %429 = vmatpush1.msra.mxu0 0.0
  %430 = vmatprep.subr.mxu0 0.0
  %431 = vmatpush1.msra.mxu0 0.0
  %432 = vmatprep.subr.mxu0 0.0
  %433 = vmatpush1.msra.mxu0 0.0
  %434 = vmatprep.subr.mxu0 0.0
  %435 = vmatpush1.msra.mxu0 0.0
  %436 = vmatprep.subr.mxu0 0.0
  %437 = vmatpush1.msra.mxu0 0.0
  %438 = vmatprep.subr.mxu0 0.0
  %439 = vmatpush1.msra.mxu0 0.0
  %440 = vmatprep.subr.mxu0 0.0
  %441 = vmatpush1.msra.mxu0 0.0
  %442 = vmatprep.subr.mxu0 0.0
  %443 = vmatpush1.msra.mxu0 0.0
  %444 = vmatprep.subr.mxu0 0.0
  %445 = vmatpush1.msra.mxu0 0.0
  %446 = vmatprep.subr.mxu0 0.0
  %447 = vmatpush1.msra.mxu0 0.0
  %448 = vmatprep.subr.mxu0 0.0
  %449 = vmatpush1.msra.mxu0 0.0
  %450 = vmatprep.subr.mxu0 0.0
  %451 = vmatpush1.msra.mxu0 0.0
  %452 = vmatprep.subr.mxu0 0.0
  %453 = vmatpush1.msra.mxu0 0.0
  %454 = vmatprep.subr.mxu0 0.0
  %455 = vmatpush1.msra.mxu0 0.0
  %456 = vmatprep.subr.mxu0 0.0
  %457 = vmatpush1.msra.mxu0 0.0
  %458 = vmatprep.subr.mxu0 0.0
  %459 = vmatpush1.msra.mxu0 0.0
  %460 = vmatprep.subr.mxu0 0.0
  %461 = vmatpush1.msra.mxu0 0.0
  %462 = vmatprep.subr.mxu0 0.0
  %463 = vmatpush1.msra.mxu0 0.0
  %464 = vmatprep.subr.mxu0 0.0
  %465 = vmatpush1.msra.mxu0 0.0
  %466 = vmatprep.subr.mxu0 0.0
  %467 = vmatpush1.msra.mxu0 0.0
  %468 = vmatprep.subr.mxu0 0.0
  %469 = vmatpush1.msra.mxu0 0.0
  %470 = vmatprep.subr.mxu0 0.0
  %471 = vmatpush1.msra.mxu0 0.0
  %472 = vmatprep.subr.mxu0 0.0
  %473 = vmatpush1.msra.mxu0 0.0
  %474 = vmatprep.mubr.f32.mxu0 0.0
  %475 = vmatmul.mubr.f32.gmra.mrb[0].mxu0 %v408
  %v476 = vpop.f32.mrb[0].mxu0
  %v477 = vadd.f32 %v405, %v476
  %v478 = vpop.f32.mrb[0].mxu0
  %479 = vdwg.mxu0
  %v480 = vmax.f32 %v477, 0.0
  %v481 = vand.u32 2147483647, %v477
  %v482 = vsub.f32 0.0, %v481
  %v483 = vmul.f32 %v482, 1.442695
  %v484 = vpow.pop %v483
  %v485 = vadd.f32 %v484, 1.0
  %v486 = vlog2.pop %v485
  %v487 = vmul.f32 %v486, 0.6931472
  %v488 = vadd.f32 %v480, %v487
  %v489 = vld [vmem:[%s7] sm:$0x1]
  %v491 = vlaneseq
  %v492 = vshrl.u32 %v491, 7
  %v493 = vsub.s32 0, %v492
  %v494 = vrot.slane %v489, %v493
  %v496 = vmul.f32 %v488, %v494
  %v497 = vsel %vm122, %v496, 0.0
  %498 = vadd.xlane.f32.xlu0 %v497
  %v499 = vpop.xlane.xlu0 %498
  %v500 = vld [vmem:[#allocation2] sm:$0x1]
  %v502 = vlaneseq
  %v503 = vshrl.u32 %v502, 7
  %v504 = vsub.s32 0, %v503
  %v505 = vrot.slane %v500, %v504
  %v507 = vadd.f32 %v499, %v505
  %vm508 = vcmask 1024
  %509 = vst.msk [vmem:[%s9] sm:$0x3] %vm508, %v507
  // Predicated region
  $region38: #{cgcnn_forward.9} parent=0 // pred_check
    _
  $region39: #{cgcnn_forward.9} parent=0 // pred_check_branch
    %511 = sbr.rel (0) target = $region41
  $region40: #{cgcnn_forward.9} parent=0 // pred_region
    _
  $region41: #{cgcnn_forward.9} parent=0 // pred_fallthru
    _
  // Predicated region
  $region42: #{cgcnn_forward.9} parent=0 // pred_check
    _
  $region43: #{cgcnn_forward.9} parent=0 // pred_check_branch
    %513 = sbr.rel (0) target = $region45
  $region44: #{cgcnn_forward.9} parent=0 // pred_region
    _
  $region45: #{cgcnn_forward.9} parent=0 // pred_fallthru
    _

</llo_original>
